<compile_context>
chip_gen: v5e
topology: v5e:2x2
jax: 0.10.0
libtpu: 0.0.40
codegen_flags: <defaults>
</compile_context>

<pallas_src>
import functools
import math

import jax
import jax.numpy as jnp
from jax.experimental import pallas as pl
from jax.experimental.pallas import tpu as pltpu


def _round_up(x, m):
    return (x + m - 1) // m * m


def sgfe_kernel(xT_ref, wqkvT_ref, bqkvT_ref, wfcT_ref, bfcT_ref, oT_ref, *,
                exp_dtype=jnp.float32):
    hid = oT_ref.shape[0]

    # Fused Q/K/V projection, transposed: qkv^T = W_qkv^T @ x^T + b_qkv.
    # Query rows/bias were pre-divided by sqrt(hid // n_heads) in prepare_params.
    qkvT = jnp.dot(wqkvT_ref[...], xT_ref[...],
                   preferred_element_type=jnp.float32) + bqkvT_ref[...]
    qT = qkvT[0:hid, :]                              # (hid, tb), already scaled
    kT = qkvT[hid:2 * hid, :]                        # (hid, tb)
    vT = qkvT[2 * hid:3 * hid, :]                    # (hid, tb)

    # Analytic row-max of the rank-1 slab a[i,j,b] = qT[i,b] * kT[j,b]:
    #   max_j a = q*max_j(k) if q >= 0 else q*min_j(k)   (exact)
    kmax = jnp.max(kT, axis=0, keepdims=True)        # (1, tb)
    kmin = jnp.min(kT, axis=0, keepdims=True)        # (1, tb)
    m = qT * jnp.where(qT >= 0, kmax, kmin)          # (hid, tb)

    # TODO(synk): mask != None branch (masked_fill with -1e10) not wired in;
    # the module's default call path uses mask=None.

    # Attention slab with the batch on the lane axis (lane dense for hid < 128).
    a = qT[:, None, :] * kT[None, :, :]              # (hid, hid, tb)
    z = a - m[:, None, :]

    if exp_dtype == jnp.float32:
        p = jnp.exp(z)                                        # (hid, hid, tb)
        denom = jnp.sum(p, axis=1)                            # (hid, tb)
        num = jnp.sum(p * vT[None, :, :], axis=1)             # (hid, tb)
    else:
        # Optional bf16 exp path (v6e/v7x EUP/VPU are bf16-capable); f32 accum.
        p = jnp.exp(z.astype(exp_dtype))
        denom = jnp.sum(p, axis=1, dtype=jnp.float32)
        num = jnp.sum(p * vT[None, :, :].astype(exp_dtype), axis=1,
                      dtype=jnp.float32)

    # TODO(synk): F.dropout(attention, p=0.5) and dropout on the fc output are
    # stochastic; eval-mode (identity) semantics used here.

    # Deferred softmax normalization: one reciprocal + mul on (hid, tb) instead
    # of normalizing the full (hid, hid, tb) slab.
    aggT = num * pl.reciprocal(denom, approx=True)   # (hid, tb)

    # Output projection: out^T = W_fc^T @ agg^T + b_fc.
    outT = jnp.dot(wfcT_ref[...], aggT,
                   preferred_element_type=jnp.float32) + bfcT_ref[...]
    oT_ref[...] = outT.astype(oT_ref.dtype)


def prepare_params(wq, bq, wk, bk, wv, bv, wfc, bfc, *, n_heads=1):
    """One-time parameter fusion (hoisted out of the per-call path).

    Returns (wqkvT, bqkvT, wfcT, bfcT) with the query weights/bias pre-divided
    by sqrt(hid // n_heads) and everything laid out transposed for the kernel.
    """
    hid = wq.shape[0]
    assert hid % n_heads == 0
    if n_heads != 1:
        # TODO(synk): multi-head (n_heads > 1) head-split + output interleave
        # not implemented; the module's default n_heads=1 is covered.
        raise NotImplementedError("n_heads > 1 not implemented")
    scale = math.sqrt(hid // n_heads)
    wqkvT = jnp.concatenate([wq / scale, wk, wv], axis=1).T        # (3*hid, hid)
    bqkvT = jnp.concatenate([bq / scale, bk, bv]).reshape(3 * hid, 1)
    return wqkvT, bqkvT, wfc.T, bfc.reshape(hid, 1)


def structure_guided_feature_enhancement(x, params, *, block_b=512,
                                         exp_dtype=jnp.float32):
    """Pallas forward pass of StructureGuidedFeatureEnhancement (eval, mask=None)."""
    wqkvT, bqkvT, wfcT, bfcT = params
    B, hid = x.shape
    assert hid % 8 == 0, "hid must be a multiple of 8 (sublane tiling)"
    assert wqkvT.shape == (3 * hid, hid)

    # Batch maps to the lane axis inside the kernel -> tile must be a multiple
    # of 128 lanes. Clamp to the padded batch, then cap the tile so the
    # (hid, hid, tb) f32 working set stays inside a conservative VMEM budget
    # (safe for v7x's 64 MiB physical VMEM).
    tb = max(128, min(_round_up(block_b, 128), _round_up(B, 128)))
    while tb > 128 and 4 * hid * hid * tb * 4 > 24 * 1024 * 1024:
        tb = max(128, _round_up(tb // 2, 128))

    num_tiles = pl.cdiv(B, tb)
    Bp = num_tiles * tb
    xp = x if Bp == B else jnp.pad(x, ((0, Bp - B), (0, 0)))
    xT = xp.T                                                    # (hid, Bp)

    # Explicit scoped-VMEM hint: exceeds v5e's 16 MiB default when needed,
    # stays well under v7x's 64 MiB physical.
    vmem_est = (4 * hid * hid * tb * 4            # a / p / p*v slab (+ slack)
                + 2 * 2 * hid * tb * 4            # x / out tiles, double-buffered
                + 2 * 3 * hid * tb * 4            # qkv^T temporaries
                + 2 * (4 * hid * hid + 4 * hid) * 4)  # weights, double-buffered
    vmem_limit = int(min(56 * 1024 * 1024,
                         max(32 * 1024 * 1024, 1.5 * vmem_est)))

    flops = (2 * Bp * hid * 3 * hid              # fused QKV matmul
             + 2 * Bp * hid * hid                # fc matmul
             + 6 * Bp * hid * hid)               # slab elementwise work
    transcendentals = Bp * hid * hid + Bp * hid
    bytes_accessed = (2 * Bp * hid + 4 * hid * hid + 4 * hid) * 4

    kernel = functools.partial(sgfe_kernel, exp_dtype=exp_dtype)

    outT = pl.pallas_call(
        kernel,
        out_shape=jax.ShapeDtypeStruct((hid, Bp), jnp.float32),
        grid=(num_tiles,),
        in_specs=[
            pl.BlockSpec((hid, tb), lambda i: (0, i)),           # x^T tile
            pl.BlockSpec((3 * hid, hid), lambda i: (0, 0)),      # fused W_qkv^T
            pl.BlockSpec((3 * hid, 1), lambda i: (0, 0)),        # fused b_qkv
            pl.BlockSpec((hid, hid), lambda i: (0, 0)),          # W_fc^T
            pl.BlockSpec((hid, 1), lambda i: (0, 0)),            # b_fc
        ],
        out_specs=pl.BlockSpec((hid, tb), lambda i: (0, i)),     # lane-dense out
        compiler_params=pltpu.CompilerParams(
            dimension_semantics=("parallel",),
            vmem_limit_bytes=vmem_limit),
        cost_estimate=pl.CostEstimate(
            flops=int(flops), transcendentals=int(transcendentals),
            bytes_accessed=int(bytes_accessed)),
    )(xT, wqkvT, bqkvT, wfcT, bfcT)

    out = outT.T                     # cheap wrapper-side transpose back to (B, hid)
    return out[:B] if Bp != B else out


def _ref_forward(x, wq, bq, wk, bk, wv, bv, wfc, bfc, n_heads=1):
    """Pure-JAX mirror of the PyTorch module (eval mode, mask=None)."""
    B, hid = x.shape
    d = hid // n_heads
    scale = math.sqrt(d)
    Q = x @ wq + bq
    K = x @ wk + bk
    V = x @ wv + bv
    Q = Q.reshape(B, n_heads, d)[..., None]                                  # (B,H,d,1)
    K_T = jnp.transpose(K.reshape(B, n_heads, d)[..., None], (0, 1, 3, 2))   # (B,H,1,d)
    V = V.reshape(B, n_heads, d)[..., None]                                  # (B,H,d,1)
    A = jnp.matmul(Q, K_T) / scale                                           # (B,H,d,d)
    att = jax.nn.softmax(A, axis=-1)
    agg = jnp.matmul(att, V)                                                 # (B,H,d,1)
    agg = jnp.transpose(agg, (0, 2, 1, 3)).reshape(B, hid)
    return agg @ wfc + bfc


if __name__ == "__main__":
    # Small shapes implied by the module: x is (batch, hid_dim).
    B, hid_dim, n_heads = 16, 32, 1

    key = jax.random.PRNGKey(0)
    keys = jax.random.split(key, 9)

    def linear_init(kw, kb, fan_in, fan_out):
        # PyTorch nn.Linear default init: U(-1/sqrt(fan_in), 1/sqrt(fan_in)).
        bound = 1.0 / math.sqrt(fan_in)
        w = jax.random.uniform(kw, (fan_in, fan_out), jnp.float32, -bound, bound)
        b = jax.random.uniform(kb, (fan_out,), jnp.float32, -bound, bound)
        return w, b

    wq, bq = linear_init(keys[0], keys[1], hid_dim, hid_dim)
    wk, bk = linear_init(keys[2], keys[3], hid_dim, hid_dim)
    wv, bv = linear_init(keys[4], keys[5], hid_dim, hid_dim)
    wfc, bfc = linear_init(keys[6], keys[7], hid_dim, hid_dim)
    x = jax.random.normal(keys[8], (B, hid_dim), dtype=jnp.float32)

    # One-time parameter fusion (hoisted out of the forward path).
    params = prepare_params(wq, bq, wk, bk, wv, bv, wfc, bfc, n_heads=n_heads)

    out = structure_guided_feature_enhancement(x, params, block_b=512)
    jax.block_until_ready(out)

    ref = _ref_forward(x, wq, bq, wk, bk, wv, bv, wfc, bfc, n_heads=n_heads)
    assert out.shape == ref.shape
    # Tolerance loosened slightly for pl.reciprocal(approx=True) in the softmax.
    assert jnp.allclose(out, ref, atol=2e-3, rtol=2e-3), (
        f"max abs err = {float(jnp.max(jnp.abs(out - ref)))}")

    print("KERNEL_OK")
</pallas_src>

<mosaic_0001>
module attributes {stable_mosaic.version = 11 : i64} {
  func.func @sgfe_kernel(%arg0: i32, %arg1: memref<32x128xf32, #tpu.memory_space<vmem>>, %arg2: memref<96x32xf32, #tpu.memory_space<vmem>>, %arg3: memref<96x1xf32, #tpu.memory_space<vmem>>, %arg4: memref<32x32xf32, #tpu.memory_space<vmem>>, %arg5: memref<32x1xf32, #tpu.memory_space<vmem>>, %arg6: memref<32x128xf32, #tpu.memory_space<vmem>>) attributes {dimension_semantics = [#tpu.dimension_semantics<parallel>], iteration_bounds = array<i64: 1>, scalar_prefetch = 0 : i64, scratch_operands = 0 : i64, tpu.core_type = #tpu.core_type<tc>, window_params = [{transform_indices = @transform_0, window_bounds = array<i64: 32, 128>}, {pipeline_mode = #tpu.pipeline_mode<synchronous>, transform_indices = @transform_1, window_bounds = array<i64: 96, 32>}, {pipeline_mode = #tpu.pipeline_mode<synchronous>, transform_indices = @transform_2, window_bounds = array<i64: 96, 1>}, {pipeline_mode = #tpu.pipeline_mode<synchronous>, transform_indices = @transform_3, window_bounds = array<i64: 32, 32>}, {pipeline_mode = #tpu.pipeline_mode<synchronous>, transform_indices = @transform_4, window_bounds = array<i64: 32, 1>}, {transform_indices = @transform_5, window_bounds = array<i64: 32, 128>}]} {
    %c0 = arith.constant 0 : index
    %c0_0 = arith.constant 0 : index
    %0 = vector.load %arg2[%c0, %c0_0] : memref<96x32xf32, #tpu.memory_space<vmem>>, vector<96x32xf32>
    %c0_1 = arith.constant 0 : index
    %c0_2 = arith.constant 0 : index
    %1 = vector.load %arg1[%c0_1, %c0_2] : memref<32x128xf32, #tpu.memory_space<vmem>>, vector<32x128xf32>
    %cst = arith.constant dense<0.000000e+00> : vector<96x128xf32>
    %2 = tpu.matmul %0, %1, %cst {dimension_numbers = #tpu.dot_dimension_numbers<[1], [0], [0], [1], [0, 0, 1, 1], [], []>} : vector<96x32xf32>, vector<32x128xf32>, vector<96x128xf32> -> vector<96x128xf32>
    %c0_3 = arith.constant 0 : index
    %c0_4 = arith.constant 0 : index
    %3 = vector.load %arg3[%c0_3, %c0_4] : memref<96x1xf32, #tpu.memory_space<vmem>>, vector<96x1xf32>
    %4 = vector.broadcast %3 : vector<96x1xf32> to vector<96x128xf32>
    %5 = arith.addf %2, %4 : vector<96x128xf32>
    %6 = vector.extract_strided_slice %5 {offsets = [0, 0], sizes = [32, 128], strides = [1, 1]} : vector<96x128xf32> to vector<32x128xf32>
    %7 = vector.extract_strided_slice %5 {offsets = [32, 0], sizes = [32, 128], strides = [1, 1]} : vector<96x128xf32> to vector<32x128xf32>
    %8 = vector.extract_strided_slice %5 {offsets = [64, 0], sizes = [32, 128], strides = [1, 1]} : vector<96x128xf32> to vector<32x128xf32>
    %cst_5 = arith.constant dense<0xFF800000> : vector<128xf32>
    %9 = vector.multi_reduction <maximumf>, %7, %cst_5 [0] : vector<32x128xf32> to vector<128xf32>
    %10 = vector.shape_cast %9 : vector<128xf32> to vector<1x128xf32>
    %cst_6 = arith.constant dense<0x7F800000> : vector<128xf32>
    %11 = vector.multi_reduction <minimumf>, %7, %cst_6 [0] : vector<32x128xf32> to vector<128xf32>
    %12 = vector.shape_cast %11 : vector<128xf32> to vector<1x128xf32>
    %cst_7 = arith.constant 0.000000e+00 : f32
    %13 = vector.broadcast %cst_7 : f32 to vector<32x128xf32>
    %14 = arith.cmpf oge, %6, %13 : vector<32x128xf32>
    %15 = vector.shape_cast %10 : vector<1x128xf32> to vector<1x128xf32>
    %16 = vector.broadcast %15 : vector<1x128xf32> to vector<32x128xf32>
    %17 = vector.shape_cast %12 : vector<1x128xf32> to vector<1x128xf32>
    %18 = vector.broadcast %17 : vector<1x128xf32> to vector<32x128xf32>
    %19 = arith.select %14, %16, %18 : vector<32x128xi1>, vector<32x128xf32>
    %20 = arith.mulf %6, %19 : vector<32x128xf32>
    %21 = vector.shape_cast %6 : vector<32x128xf32> to vector<32x1x128xf32>
    %22 = vector.shape_cast %7 : vector<32x128xf32> to vector<1x32x128xf32>
    %23 = vector.broadcast %21 : vector<32x1x128xf32> to vector<32x32x128xf32>
    %24 = vector.broadcast %22 : vector<1x32x128xf32> to vector<32x32x128xf32>
    %25 = arith.mulf %23, %24 : vector<32x32x128xf32>
    %26 = vector.shape_cast %20 : vector<32x128xf32> to vector<32x1x128xf32>
    %27 = vector.broadcast %26 : vector<32x1x128xf32> to vector<32x32x128xf32>
    %28 = arith.subf %25, %27 : vector<32x32x128xf32>
    %29 = math.exp %28 : vector<32x32x128xf32>
    %cst_8 = arith.constant dense<0.000000e+00> : vector<32x128xf32>
    %30 = vector.multi_reduction <add>, %29, %cst_8 [1] : vector<32x32x128xf32> to vector<32x128xf32>
    %31 = vector.shape_cast %8 : vector<32x128xf32> to vector<1x32x128xf32>
    %32 = vector.broadcast %31 : vector<1x32x128xf32> to vector<32x32x128xf32>
    %33 = arith.mulf %29, %32 : vector<32x32x128xf32>
    %cst_9 = arith.constant dense<0.000000e+00> : vector<32x128xf32>
    %34 = vector.multi_reduction <add>, %33, %cst_9 [1] : vector<32x32x128xf32> to vector<32x128xf32>
    %35 = tpu.reciprocal %30 {approx = true} : vector<32x128xf32> -> vector<32x128xf32>
    %36 = arith.mulf %34, %35 : vector<32x128xf32>
    %c0_10 = arith.constant 0 : index
    %c0_11 = arith.constant 0 : index
    %37 = vector.load %arg4[%c0_10, %c0_11] : memref<32x32xf32, #tpu.memory_space<vmem>>, vector<32x32xf32>
    %cst_12 = arith.constant dense<0.000000e+00> : vector<32x128xf32>
    %38 = tpu.matmul %37, %36, %cst_12 {dimension_numbers = #tpu.dot_dimension_numbers<[1], [0], [0], [1], [0, 0, 1, 1], [], []>} : vector<32x32xf32>, vector<32x128xf32>, vector<32x128xf32> -> vector<32x128xf32>
    %c0_13 = arith.constant 0 : index
    %c0_14 = arith.constant 0 : index
    %39 = vector.load %arg5[%c0_13, %c0_14] : memref<32x1xf32, #tpu.memory_space<vmem>>, vector<32x1xf32>
    %40 = vector.broadcast %39 : vector<32x1xf32> to vector<32x128xf32>
    %41 = arith.addf %38, %40 : vector<32x128xf32>
    %c0_15 = arith.constant 0 : index
    %c0_16 = arith.constant 0 : index
    %42 = vector.load %arg6[%c0_15, %c0_16] : memref<32x128xf32, #tpu.memory_space<vmem>>, vector<32x128xf32>
    tpu.vector_store %arg6[%c0_15, %c0_16], %41 {strides = array<i32>} : memref<32x128xf32, #tpu.memory_space<vmem>>, vector<32x128xf32>,
    return
  }
  func.func @transform_0(%arg0: i32) -> (i32, i32) {
    %c0_i32 = arith.constant 0 : i32
    %c0_i32_0 = arith.constant 0 : i32
    return %c0_i32, %arg0 : i32, i32
  }
  func.func @transform_1(%arg0: i32) -> (i32, i32) {
    %c0_i32 = arith.constant 0 : i32
    %c0_i32_0 = arith.constant 0 : i32
    %c0_i32_1 = arith.constant 0 : i32
    return %c0_i32, %c0_i32_0 : i32, i32
  }
  func.func @transform_2(%arg0: i32) -> (i32, i32) {
    %c0_i32 = arith.constant 0 : i32
    %c0_i32_0 = arith.constant 0 : i32
    %c0_i32_1 = arith.constant 0 : i32
    return %c0_i32, %c0_i32_0 : i32, i32
  }
  func.func @transform_3(%arg0: i32) -> (i32, i32) {
    %c0_i32 = arith.constant 0 : i32
    %c0_i32_0 = arith.constant 0 : i32
    %c0_i32_1 = arith.constant 0 : i32
    return %c0_i32, %c0_i32_0 : i32, i32
  }
  func.func @transform_4(%arg0: i32) -> (i32, i32) {
    %c0_i32 = arith.constant 0 : i32
    %c0_i32_0 = arith.constant 0 : i32
    %c0_i32_1 = arith.constant 0 : i32
    return %c0_i32, %c0_i32_0 : i32, i32
  }
  func.func @transform_5(%arg0: i32) -> (i32, i32) {
    %c0_i32 = arith.constant 0 : i32
    %c0_i32_0 = arith.constant 0 : i32
    return %c0_i32, %arg0 : i32, i32
  }
}

</mosaic_0001>

<llo_original>
// kernel: tpu_custom_call.1
$region0: #{tpu_custom_call.1}
  #allocation0 [shape = 'u32[]', space=smem, size = 0x4, offset = 0x4, fixed_abs, tag = 'smem constant byte address 0x4 - core index']
  #allocation1 [shape = 'u32[72,128]{1,0:T(1,128)}', space=vmem, size = 0x9000, scoped, tag = 'internal scratch']
  %s0 = inlined_call_operand.vmem [shape: f32[32,128], index: 0, kind: input, shape index: {}]
  %s1 = inlined_call_operand.vmem [shape: f32[96,32], index: 1, kind: input, shape index: {}]
  %s2 = inlined_call_operand.vmem [shape: f32[96,1], index: 2, kind: input, shape index: {}]
  %s3 = inlined_call_operand.vmem [shape: f32[32,32], index: 3, kind: input, shape index: {}]
  %s4 = inlined_call_operand.vmem [shape: f32[32,1], index: 4, kind: input, shape index: {}]
  %s5 = inlined_call_operand.hbm [shape: f32[32,128], index: 5, kind: output, shape index: {}]
  %s6 = sld [smem:[#allocation0]]
  $region30: #{tpu_custom_call.1} parent=0
    _
  %s8 = ssub.s32 1, %s6
  %s9 = scalar_select 0, %s8, %s6
  $region1: #{tpu_custom_call.1} parent=0
    #allocation2 [shape = 'u8[16384]{0}', space=vmem, size = 0x4000, scoped, tag = 'output window, operand 0, single buffered']
    #allocation3 [shape = 's32[1]{0}', space=sflag, size = 0x4, scoped, tag = 'scoped memory for tpu_custom_call.1']
    %10 = vsyncpa [#allocation3], 0
    // Predicated region
    $region2: #{tpu_custom_call.1} parent=1 // pred_check
      _
    $region3: #{tpu_custom_call.1} parent=1 // pred_check_branch
      %12 = sbr.rel (0) target = $region5
    $region4: #{tpu_custom_call.1} parent=1 // pred_region
      _
    $region5: #{tpu_custom_call.1} parent=1 // pred_fallthru
      _
    // Predicated region
    $region6: #{tpu_custom_call.1} parent=1 // pred_check
      _
    $region7: #{tpu_custom_call.1} parent=1 // pred_check_branch
      %14 = sbr.rel (0) target = $region9
    $region8: #{tpu_custom_call.1} parent=1 // pred_region
      _
    $region9: #{tpu_custom_call.1} parent=1 // pred_fallthru
      _
    // Predicated region
    $region10: #{tpu_custom_call.1} parent=1 // pred_check
      _
    $region11: #{tpu_custom_call.1} parent=1 // pred_check_branch
      %16 = sbr.rel (0) target = $region13
    $region12: #{tpu_custom_call.1} parent=1 // pred_region
      _
    $region13: #{tpu_custom_call.1} parent=1 // pred_fallthru
      _
    // Predicated region
    $region14: #{tpu_custom_call.1} parent=1 // pred_check
      _
    $region15: #{tpu_custom_call.1} parent=1 // pred_check_branch
      %18 = sbr.rel (0) target = $region17
    $region16: #{tpu_custom_call.1} parent=1 // pred_region
      _
    $region17: #{tpu_custom_call.1} parent=1 // pred_fallthru
      _
    // Predicated region
    $region18: #{tpu_custom_call.1} parent=1 // pred_check
      _
    $region19: #{tpu_custom_call.1} parent=1 // pred_check_branch
      %20 = sbr.rel (0) target = $region21
    $region20: #{tpu_custom_call.1} parent=1 // pred_region
      _
    $region21: #{tpu_custom_call.1} parent=1 // pred_fallthru
      _
    %v21 = vld [vmem:[%s1] sm:$0xff]
    %v22 = vld [vmem:[%s1 + $0x8] sm:$0xff]
    %v23 = vld [vmem:[%s1 + $0x10] sm:$0xff]
    %v24 = vld [vmem:[%s1 + $0x18] sm:$0xff]
    %v25 = vld [vmem:[%s1 + $0x20] sm:$0xff]
    %v26 = vld [vmem:[%s1 + $0x28] sm:$0xff]
    %v27 = vld [vmem:[%s1 + $0x30] sm:$0xff]
    %v28 = vld [vmem:[%s1 + $0x38] sm:$0xff]
    %v29 = vld [vmem:[%s1 + $0x40] sm:$0xff]
    %v30 = vld [vmem:[%s1 + $0x48] sm:$0xff]
    %v31 = vld [vmem:[%s1 + $0x50] sm:$0xff]
    %v32 = vld [vmem:[%s1 + $0x58] sm:$0xff]
    %v33 = vld [vmem:[%s0] sm:$0xff]
    %v34 = vld [vmem:[%s0 + $0x8] sm:$0xff]
    %v35 = vld [vmem:[%s0 + $0x10] sm:$0xff]
    %v36 = vld [vmem:[%s0 + $0x18] sm:$0xff]
    %v37 = vld [vmem:[%s2] sm:$0xff]
    %v38 = vld [vmem:[%s2 + $0x8] sm:$0xff]
    %v39 = vld [vmem:[%s2 + $0x10] sm:$0xff]
    %v40 = vld [vmem:[%s2 + $0x18] sm:$0xff]
    %v41 = vld [vmem:[%s2 + $0x20] sm:$0xff]
    %v42 = vld [vmem:[%s2 + $0x28] sm:$0xff]
    %v43 = vld [vmem:[%s2 + $0x30] sm:$0xff]
    %v44 = vld [vmem:[%s2 + $0x38] sm:$0xff]
    %v45 = vld [vmem:[%s2 + $0x40] sm:$0xff]
    %v46 = vld [vmem:[%s2 + $0x48] sm:$0xff]
    %v47 = vld [vmem:[%s2 + $0x50] sm:$0xff]
    %v48 = vld [vmem:[%s2 + $0x58] sm:$0xff]
    %50 = vset.pattern.permute.xlu0 0
    %51 = vperm.xlu0 %50, %v37
    %v52 = vpop.permute.xlu0 %51
    %55 = vset.pattern.permute.xlu0 0
    %56 = vperm.xlu0 %55, %v38
    %v57 = vpop.permute.xlu0 %56
    %60 = vset.pattern.permute.xlu0 0
    %61 = vperm.xlu0 %60, %v39
    %v62 = vpop.permute.xlu0 %61
    %65 = vset.pattern.permute.xlu0 0
    %66 = vperm.xlu0 %65, %v40
    %v67 = vpop.permute.xlu0 %66
    %70 = vset.pattern.permute.xlu0 0
    %71 = vperm.xlu0 %70, %v41
    %v72 = vpop.permute.xlu0 %71
    %75 = vset.pattern.permute.xlu0 0
    %76 = vperm.xlu0 %75, %v42
    %v77 = vpop.permute.xlu0 %76
    %80 = vset.pattern.permute.xlu0 0
    %81 = vperm.xlu0 %80, %v43
    %v82 = vpop.permute.xlu0 %81
    %85 = vset.pattern.permute.xlu0 0
    %86 = vperm.xlu0 %85, %v44
    %v87 = vpop.permute.xlu0 %86
    %90 = vset.pattern.permute.xlu0 0
    %91 = vperm.xlu0 %90, %v45
    %v92 = vpop.permute.xlu0 %91
    %95 = vset.pattern.permute.xlu0 0
    %96 = vperm.xlu0 %95, %v46
    %v97 = vpop.permute.xlu0 %96
    %100 = vset.pattern.permute.xlu0 0
    %101 = vperm.xlu0 %100, %v47
    %v102 = vpop.permute.xlu0 %101
    %105 = vset.pattern.permute.xlu0 0
    %106 = vperm.xlu0 %105, %v48
    %v107 = vpop.permute.xlu0 %106
    %vm109 = vcmask 261120
    %v111 = vsel %vm109, %v21, 0
    %v114 = vsel %vm109, %v22, 0
    %v117 = vsel %vm109, %v23, 0
    %v120 = vsel %vm109, %v24, 0
    %v123 = vsel %vm109, %v25, 0
    %v126 = vsel %vm109, %v26, 0
    %v129 = vsel %vm109, %v27, 0
    %v132 = vsel %vm109, %v28, 0
    %v135 = vsel %vm109, %v29, 0
    %v138 = vsel %vm109, %v30, 0
    %v141 = vsel %vm109, %v31, 0
    %v144 = vsel %vm109, %v32, 0
    %146 = vmatpush.msra.mxu0 0.0
    %147 = vmatpush.msra.mxu0 0.0
    %148 = vmatpush.msra.mxu0 0.0
    %149 = vmatpush.msra.mxu0 0.0
    %150 = vmatpush.msra.mxu0 0.0
    %151 = vmatpush.msra.mxu0 0.0
    %152 = vmatpush.msra.mxu0 0.0
    %153 = vmatpush.msra.mxu0 0.0
    %154 = vmatpush.msra.mxu0 0.0
    %155 = vmatpush.msra.mxu0 0.0
    %156 = vmatpush.msra.mxu0 0.0
    %157 = vmatpush.msra.mxu0 0.0
    %158 = vmatpush.msra.mxu0 %v36
    %159 = vmatpush.msra.mxu0 %v35
    %160 = vmatpush.msra.mxu0 %v34
    %161 = vmatpush.msra.mxu0 %v33
    %162 = vmatmul.f32.gmra.mxu0 %v111
    %v163 = vpop.f32.mrf.mxu0
    %v164 = vadd.f32 %v52, %v163
    %165 = vmatmul.f32.gmra.mxu0 %v114
    %v166 = vpop.f32.mrf.mxu0
    %v167 = vadd.f32 %v57, %v166
    %168 = vmatmul.f32.gmra.mxu0 %v117
    %v169 = vpop.f32.mrf.mxu0
    %v170 = vadd.f32 %v62, %v169
    %171 = vmatmul.f32.gmra.mxu0 %v120
    %v172 = vpop.f32.mrf.mxu0
    %v173 = vadd.f32 %v67, %v172
    %174 = vmatmul.f32.gmra.mxu0 %v123
    %v175 = vpop.f32.mrf.mxu0
    %v176 = vadd.f32 %v72, %v175
    %177 = vmatmul.f32.gmra.mxu0 %v126
    %v178 = vpop.f32.mrf.mxu0
    %v179 = vadd.f32 %v77, %v178
    %180 = vmatmul.f32.gmra.mxu0 %v129
    %v181 = vpop.f32.mrf.mxu0
    %v182 = vadd.f32 %v82, %v181
    %183 = vmatmul.f32.gmra.mxu0 %v132
    %v184 = vpop.f32.mrf.mxu0
    %v185 = vadd.f32 %v87, %v184
    %186 = vmatmul.f32.gmra.mxu0 %v135
    %v187 = vpop.f32.mrf.mxu0
    %v188 = vadd.f32 %v92, %v187
    %189 = vmatmul.f32.gmra.mxu0 %v138
    %v190 = vpop.f32.mrf.mxu0
    %v191 = vadd.f32 %v97, %v190
    %192 = vmatmul.f32.gmra.mxu0 %v141
    %v193 = vpop.f32.mrf.mxu0
    %v194 = vadd.f32 %v102, %v193
    %195 = vmatmul.f32.gmra.mxu0 %v144
    %v196 = vpop.f32.mrf.mxu0
    %v197 = vadd.f32 %v107, %v196
    %198 = vdwg.mxu0
    %v199 = vmax.f32 %v176, %v179
    %v200 = vmax.f32 %v182, %v185
    %v201 = vmax.f32 %v199, %v200
    %v202 = vrot.slane %v201, 4
    %v203 = vmax.f32 %v201, %v202
    %v204 = vrot.slane %v203, 2
    %v205 = vmax.f32 %v203, %v204
    %v206 = vrot.slane %v205, 1
    %v207 = vmax.f32 %v205, %v206
    %v208 = vmin.f32 %v176, %v179
    %v209 = vmin.f32 %v182, %v185
    %v210 = vmin.f32 %v208, %v209
    %v211 = vrot.slane %v210, 4
    %v212 = vmin.f32 %v210, %v211
    %v213 = vrot.slane %v212, 2
    %v214 = vmin.f32 %v212, %v213
    %v215 = vrot.slane %v214, 1
    %v216 = vmin.f32 %v214, %v215
    %vm217 = vcmp.ge.f32.partialorder %v164, 0.0
    %vm218 = vcmp.ge.f32.partialorder %v167, 0.0
    %vm219 = vcmp.ge.f32.partialorder %v170, 0.0
    %vm220 = vcmp.ge.f32.partialorder %v173, 0.0
    %v221 = vsel %vm217, %v207, %v216
    %v222 = vsel %vm218, %v207, %v216
    %v223 = vsel %vm219, %v207, %v216
    %v224 = vsel %vm220, %v207, %v216
    %v225 = vmul.f32 %v164, %v221
    %v226 = vmul.f32 %v167, %v222
    %v227 = vmul.f32 %v170, %v223
    %v228 = vmul.f32 %v173, %v224
    %v233 = vrot.slane %v164, 1
    %v234 = vrot.slane %v164, 2
    %v235 = vrot.slane %v164, 3
    %v236 = vrot.slane %v164, 4
    %v237 = vrot.slane %v164, 5
    %v238 = vrot.slane %v164, 6
    %v239 = vrot.slane %v164, 7
    %v240 = vrot.slane %v167, 1
    %v241 = vrot.slane %v167, 2
    %v242 = vrot.slane %v167, 3
    %v243 = vrot.slane %v167, 4
    %v244 = vrot.slane %v167, 5
    %v245 = vrot.slane %v167, 6
    %v246 = vrot.slane %v167, 7
    %v247 = vrot.slane %v170, 1
    %v248 = vrot.slane %v170, 2
    %v249 = vrot.slane %v170, 3
    %v250 = vrot.slane %v170, 4
    %v251 = vrot.slane %v170, 5
    %v252 = vrot.slane %v170, 6
    %v253 = vrot.slane %v170, 7
    %v254 = vrot.slane %v173, 1
    %v255 = vrot.slane %v173, 2
    %v256 = vrot.slane %v173, 3
    %v257 = vrot.slane %v173, 4
    %v258 = vrot.slane %v173, 5
    %v259 = vrot.slane %v173, 6
    %v260 = vrot.slane %v173, 7
    %v261 = vperm.slane %v164, 0
    %v262 = vperm.slane %v233, 0
    %v263 = vperm.slane %v234, 0
    %v264 = vperm.slane %v235, 0
    %v265 = vperm.slane %v236, 0
    %v266 = vperm.slane %v237, 0
    %v267 = vperm.slane %v238, 0
    %v268 = vperm.slane %v239, 0
    %v269 = vperm.slane %v167, 0
    %v270 = vperm.slane %v240, 0
    %v271 = vperm.slane %v241, 0
    %v272 = vperm.slane %v242, 0
    %v273 = vperm.slane %v243, 0
    %v274 = vperm.slane %v244, 0
    %v275 = vperm.slane %v245, 0
    %v276 = vperm.slane %v246, 0
    %v277 = vperm.slane %v170, 0
    %v278 = vperm.slane %v247, 0
    %v279 = vperm.slane %v248, 0
    %v280 = vperm.slane %v249, 0
    %v281 = vperm.slane %v250, 0
    %v282 = vperm.slane %v251, 0
    %v283 = vperm.slane %v252, 0
    %v284 = vperm.slane %v253, 0
    %v285 = vperm.slane %v173, 0
    %v286 = vperm.slane %v254, 0
    %v287 = vperm.slane %v255, 0
    %v288 = vperm.slane %v256, 0
    %v289 = vperm.slane %v257, 0
    %v290 = vperm.slane %v258, 0
    %v291 = vperm.slane %v259, 0
    %v292 = vperm.slane %v260, 0
    %v325 = vmul.f32 %v261, %v176
    %v326 = vmul.f32 %v261, %v179
    %v327 = vmul.f32 %v261, %v182
    %v328 = vmul.f32 %v261, %v185
    %v329 = vmul.f32 %v262, %v176
    %v330 = vmul.f32 %v262, %v179
    %v331 = vmul.f32 %v262, %v182
    %v332 = vmul.f32 %v262, %v185
    %v333 = vmul.f32 %v263, %v176
    %v334 = vmul.f32 %v263, %v179
    %v335 = vmul.f32 %v263, %v182
    %v336 = vmul.f32 %v263, %v185
    %v337 = vmul.f32 %v264, %v176
    %v338 = vmul.f32 %v264, %v179
    %v339 = vmul.f32 %v264, %v182
    %v340 = vmul.f32 %v264, %v185
    %v341 = vmul.f32 %v265, %v176
    %v342 = vmul.f32 %v265, %v179
    %v343 = vmul.f32 %v265, %v182
    %v344 = vmul.f32 %v265, %v185
    %v345 = vmul.f32 %v266, %v176
    %v346 = vmul.f32 %v266, %v179
    %v347 = vmul.f32 %v266, %v182
    %v348 = vmul.f32 %v266, %v185
    %v349 = vmul.f32 %v267, %v176
    %v350 = vmul.f32 %v267, %v179
    %v351 = vmul.f32 %v267, %v182
    %v352 = vmul.f32 %v267, %v185
    %v353 = vmul.f32 %v268, %v176
    %v354 = vmul.f32 %v268, %v179
    %v355 = vmul.f32 %v268, %v182
    %v356 = vmul.f32 %v268, %v185
    %v357 = vmul.f32 %v269, %v176
    %v358 = vmul.f32 %v269, %v179
    %v359 = vmul.f32 %v269, %v182
    %v360 = vmul.f32 %v269, %v185
    %v361 = vmul.f32 %v270, %v176
    %v362 = vmul.f32 %v270, %v179
    %v363 = vmul.f32 %v270, %v182
    %v364 = vmul.f32 %v270, %v185
    %v365 = vmul.f32 %v271, %v176
    %v366 = vmul.f32 %v271, %v179
    %v367 = vmul.f32 %v271, %v182
    %v368 = vmul.f32 %v271, %v185
    %v369 = vmul.f32 %v272, %v176
    %v370 = vmul.f32 %v272, %v179
    %v371 = vmul.f32 %v272, %v182
    %v372 = vmul.f32 %v272, %v185
    %v373 = vmul.f32 %v273, %v176
    %v374 = vmul.f32 %v273, %v179
    %v375 = vmul.f32 %v273, %v182
    %v376 = vmul.f32 %v273, %v185
    %v377 = vmul.f32 %v274, %v176
    %v378 = vmul.f32 %v274, %v179
    %v379 = vmul.f32 %v274, %v182
    %v380 = vmul.f32 %v274, %v185
    %v381 = vmul.f32 %v275, %v176
    %v382 = vmul.f32 %v275, %v179
    %v383 = vmul.f32 %v275, %v182
    %v384 = vmul.f32 %v275, %v185
    %v385 = vmul.f32 %v276, %v176
    %v386 = vmul.f32 %v276, %v179
    %v387 = vmul.f32 %v276, %v182
    %v388 = vmul.f32 %v276, %v185
    %v389 = vmul.f32 %v277, %v176
    %v390 = vmul.f32 %v277, %v179
    %v391 = vmul.f32 %v277, %v182
    %v392 = vmul.f32 %v277, %v185
    %v393 = vmul.f32 %v278, %v176
    %v394 = vmul.f32 %v278, %v179
    %v395 = vmul.f32 %v278, %v182
    %v396 = vmul.f32 %v278, %v185
    %v397 = vmul.f32 %v279, %v176
    %v398 = vmul.f32 %v279, %v179
    %v399 = vmul.f32 %v279, %v182
    %v400 = vmul.f32 %v279, %v185
    %v401 = vmul.f32 %v280, %v176
    %v402 = vmul.f32 %v280, %v179
    %v403 = vmul.f32 %v280, %v182
    %v404 = vmul.f32 %v280, %v185
    %v405 = vmul.f32 %v281, %v176
    %v406 = vmul.f32 %v281, %v179
    %v407 = vmul.f32 %v281, %v182
    %v408 = vmul.f32 %v281, %v185
    %v409 = vmul.f32 %v282, %v176
    %v410 = vmul.f32 %v282, %v179
    %v411 = vmul.f32 %v282, %v182
    %v412 = vmul.f32 %v282, %v185
    %v413 = vmul.f32 %v283, %v176
    %v414 = vmul.f32 %v283, %v179
    %v415 = vmul.f32 %v283, %v182
    %v416 = vmul.f32 %v283, %v185
    %v417 = vmul.f32 %v284, %v176
    %v418 = vmul.f32 %v284, %v179
    %v419 = vmul.f32 %v284, %v182
    %v420 = vmul.f32 %v284, %v185
    %v421 = vmul.f32 %v285, %v176
    %v422 = vmul.f32 %v285, %v179
    %v423 = vmul.f32 %v285, %v182
    %v424 = vmul.f32 %v285, %v185
    %v425 = vmul.f32 %v286, %v176
    %v426 = vmul.f32 %v286, %v179
    %v427 = vmul.f32 %v286, %v182
    %v428 = vmul.f32 %v286, %v185
    %v429 = vmul.f32 %v287, %v176
    %v430 = vmul.f32 %v287, %v179
    %v431 = vmul.f32 %v287, %v182
    %v432 = vmul.f32 %v287, %v185
    %v433 = vmul.f32 %v288, %v176
    %v434 = vmul.f32 %v288, %v179
    %v435 = vmul.f32 %v288, %v182
    %v436 = vmul.f32 %v288, %v185
    %v437 = vmul.f32 %v289, %v176
    %v438 = vmul.f32 %v289, %v179
    %v439 = vmul.f32 %v289, %v182
    %v440 = vmul.f32 %v289, %v185
    %v441 = vmul.f32 %v290, %v176
    %v442 = vmul.f32 %v290, %v179
    %v443 = vmul.f32 %v290, %v182
    %v444 = vmul.f32 %v290, %v185
    %v445 = vmul.f32 %v291, %v176
    %v446 = vmul.f32 %v291, %v179
    %v447 = vmul.f32 %v291, %v182
    %v448 = vmul.f32 %v291, %v185
    %v449 = vmul.f32 %v292, %v176
    %v450 = vmul.f32 %v292, %v179
    %v451 = vmul.f32 %v292, %v182
    %v452 = vmul.f32 %v292, %v185
    %v457 = vrot.slane %v225, 1
    %v458 = vrot.slane %v225, 2
    %v459 = vrot.slane %v225, 3
    %v460 = vrot.slane %v225, 4
    %v461 = vrot.slane %v225, 5
    %v462 = vrot.slane %v225, 6
    %v463 = vrot.slane %v225, 7
    %v464 = vrot.slane %v226, 1
    %v465 = vrot.slane %v226, 2
    %v466 = vrot.slane %v226, 3
    %v467 = vrot.slane %v226, 4
    %v468 = vrot.slane %v226, 5
    %v469 = vrot.slane %v226, 6
    %v470 = vrot.slane %v226, 7
    %v471 = vrot.slane %v227, 1
    %v472 = vrot.slane %v227, 2
    %v473 = vrot.slane %v227, 3
    %v474 = vrot.slane %v227, 4
    %v475 = vrot.slane %v227, 5
    %v476 = vrot.slane %v227, 6
    %v477 = vrot.slane %v227, 7
    %v478 = vrot.slane %v228, 1
    %v479 = vrot.slane %v228, 2
    %v480 = vrot.slane %v228, 3
    %v481 = vrot.slane %v228, 4
    %v482 = vrot.slane %v228, 5
    %v483 = vrot.slane %v228, 6
    %v484 = vrot.slane %v228, 7
    %v485 = vperm.slane %v225, 0
    %v486 = vperm.slane %v457, 0
    %v487 = vperm.slane %v458, 0
    %v488 = vperm.slane %v459, 0
    %v489 = vperm.slane %v460, 0
    %v490 = vperm.slane %v461, 0
    %v491 = vperm.slane %v462, 0
    %v492 = vperm.slane %v463, 0
    %v493 = vperm.slane %v226, 0
    %v494 = vperm.slane %v464, 0
    %v495 = vperm.slane %v465, 0
    %v496 = vperm.slane %v466, 0
    %v497 = vperm.slane %v467, 0
    %v498 = vperm.slane %v468, 0
    %v499 = vperm.slane %v469, 0
    %v500 = vperm.slane %v470, 0
    %v501 = vperm.slane %v227, 0
    %v502 = vperm.slane %v471, 0
    %v503 = vperm.slane %v472, 0
    %v504 = vperm.slane %v473, 0
    %v505 = vperm.slane %v474, 0
    %v506 = vperm.slane %v475, 0
    %v507 = vperm.slane %v476, 0
    %v508 = vperm.slane %v477, 0
    %v509 = vperm.slane %v228, 0
    %v510 = vperm.slane %v478, 0
    %v511 = vperm.slane %v479, 0
    %v512 = vperm.slane %v480, 0
    %v513 = vperm.slane %v481, 0
    %v514 = vperm.slane %v482, 0
    %v515 = vperm.slane %v483, 0
    %v516 = vperm.slane %v484, 0
    %v549 = vsub.f32 %v325, %v485
    %v550 = vsub.f32 %v326, %v485
    %v551 = vsub.f32 %v327, %v485
    %v552 = vsub.f32 %v328, %v485
    %v553 = vsub.f32 %v329, %v486
    %v554 = vsub.f32 %v330, %v486
    %v555 = vsub.f32 %v331, %v486
    %v556 = vsub.f32 %v332, %v486
    %v557 = vsub.f32 %v333, %v487
    %v558 = vsub.f32 %v334, %v487
    %v559 = vsub.f32 %v335, %v487
    %v560 = vsub.f32 %v336, %v487
    %v561 = vsub.f32 %v337, %v488
    %v562 = vsub.f32 %v338, %v488
    %v563 = vsub.f32 %v339, %v488
    %v564 = vsub.f32 %v340, %v488
    %v565 = vsub.f32 %v341, %v489
    %v566 = vsub.f32 %v342, %v489
    %v567 = vsub.f32 %v343, %v489
    %v568 = vsub.f32 %v344, %v489
    %v569 = vsub.f32 %v345, %v490
    %v570 = vsub.f32 %v346, %v490
    %v571 = vsub.f32 %v347, %v490
    %v572 = vsub.f32 %v348, %v490
    %v573 = vsub.f32 %v349, %v491
    %v574 = vsub.f32 %v350, %v491
    %v575 = vsub.f32 %v351, %v491
    %v576 = vsub.f32 %v352, %v491
    %v577 = vsub.f32 %v353, %v492
    %v578 = vsub.f32 %v354, %v492
    %v579 = vsub.f32 %v355, %v492
    %v580 = vsub.f32 %v356, %v492
    %v581 = vsub.f32 %v357, %v493
    %v582 = vsub.f32 %v358, %v493
    %v583 = vsub.f32 %v359, %v493
    %v584 = vsub.f32 %v360, %v493
    %v585 = vsub.f32 %v361, %v494
    %v586 = vsub.f32 %v362, %v494
    %v587 = vsub.f32 %v363, %v494
    %v588 = vsub.f32 %v364, %v494
    %v589 = vsub.f32 %v365, %v495
    %v590 = vsub.f32 %v366, %v495
    %v591 = vsub.f32 %v367, %v495
    %v592 = vsub.f32 %v368, %v495
    %v593 = vsub.f32 %v369, %v496
    %v594 = vsub.f32 %v370, %v496
    %v595 = vsub.f32 %v371, %v496
    %v596 = vsub.f32 %v372, %v496
    %v597 = vsub.f32 %v373, %v497
    %v598 = vsub.f32 %v374, %v497
    %v599 = vsub.f32 %v375, %v497
    %v600 = vsub.f32 %v376, %v497
    %v601 = vsub.f32 %v377, %v498
    %v602 = vsub.f32 %v378, %v498
    %v603 = vsub.f32 %v379, %v498
    %v604 = vsub.f32 %v380, %v498
    %v605 = vsub.f32 %v381, %v499
    %v606 = vsub.f32 %v382, %v499
    %v607 = vsub.f32 %v383, %v499
    %v608 = vsub.f32 %v384, %v499
    %v609 = vsub.f32 %v385, %v500
    %v610 = vsub.f32 %v386, %v500
    %v611 = vsub.f32 %v387, %v500
    %v612 = vsub.f32 %v388, %v500
    %v613 = vsub.f32 %v389, %v501
    %v614 = vsub.f32 %v390, %v501
    %v615 = vsub.f32 %v391, %v501
    %v616 = vsub.f32 %v392, %v501
    %v617 = vsub.f32 %v393, %v502
    %v618 = vsub.f32 %v394, %v502
    %v619 = vsub.f32 %v395, %v502
    %v620 = vsub.f32 %v396, %v502
    %v621 = vsub.f32 %v397, %v503
    %v622 = vsub.f32 %v398, %v503
    %v623 = vsub.f32 %v399, %v503
    %v624 = vsub.f32 %v400, %v503
    %v625 = vsub.f32 %v401, %v504
    %v626 = vsub.f32 %v402, %v504
    %v627 = vsub.f32 %v403, %v504
    %v628 = vsub.f32 %v404, %v504
    %v629 = vsub.f32 %v405, %v505
    %v630 = vsub.f32 %v406, %v505
    %v631 = vsub.f32 %v407, %v505
    %v632 = vsub.f32 %v408, %v505
    %v633 = vsub.f32 %v409, %v506
    %v634 = vsub.f32 %v410, %v506
    %v635 = vsub.f32 %v411, %v506
    %v636 = vsub.f32 %v412, %v506
    %v637 = vsub.f32 %v413, %v507
    %v638 = vsub.f32 %v414, %v507
    %v639 = vsub.f32 %v415, %v507
    %v640 = vsub.f32 %v416, %v507
    %v641 = vsub.f32 %v417, %v508
    %v642 = vsub.f32 %v418, %v508
    %v643 = vsub.f32 %v419, %v508
    %v644 = vsub.f32 %v420, %v508
    %v645 = vsub.f32 %v421, %v509
    %v646 = vsub.f32 %v422, %v509
    %v647 = vsub.f32 %v423, %v509
    %v648 = vsub.f32 %v424, %v509
    %v649 = vsub.f32 %v425, %v510
    %v650 = vsub.f32 %v426, %v510
    %v651 = vsub.f32 %v427, %v510
    %v652 = vsub.f32 %v428, %v510
    %v653 = vsub.f32 %v429, %v511
    %v654 = vsub.f32 %v430, %v511
    %v655 = vsub.f32 %v431, %v511
    %v656 = vsub.f32 %v432, %v511
    %v657 = vsub.f32 %v433, %v512
    %v658 = vsub.f32 %v434, %v512
    %v659 = vsub.f32 %v435, %v512
    %v660 = vsub.f32 %v436, %v512
    %v661 = vsub.f32 %v437, %v513
    %v662 = vsub.f32 %v438, %v513
    %v663 = vsub.f32 %v439, %v513
    %v664 = vsub.f32 %v440, %v513
    %v665 = vsub.f32 %v441, %v514
    %v666 = vsub.f32 %v442, %v514
    %v667 = vsub.f32 %v443, %v514
    %v668 = vsub.f32 %v444, %v514
    %v669 = vsub.f32 %v445, %v515
    %v670 = vsub.f32 %v446, %v515
    %v671 = vsub.f32 %v447, %v515
    %v672 = vsub.f32 %v448, %v515
    %v673 = vsub.f32 %v449, %v516
    %v674 = vsub.f32 %v450, %v516
    %v675 = vsub.f32 %v451, %v516
    %v676 = vsub.f32 %v452, %v516
    %v677 = vmul.f32 %v549, 1.442695
    %v678 = vpow.pop %v677
    %v679 = vmul.f32 %v550, 1.442695
    %v680 = vpow.pop %v679
    %v681 = vmul.f32 %v551, 1.442695
    %v682 = vpow.pop %v681
    %v683 = vmul.f32 %v552, 1.442695
    %v684 = vpow.pop %v683
    %v685 = vmul.f32 %v553, 1.442695
    %v686 = vpow.pop %v685
    %v687 = vmul.f32 %v554, 1.442695
    %v688 = vpow.pop %v687
    %v689 = vmul.f32 %v555, 1.442695
    %v690 = vpow.pop %v689
    %v691 = vmul.f32 %v556, 1.442695
    %v692 = vpow.pop %v691
    %v693 = vmul.f32 %v557, 1.442695
    %v694 = vpow.pop %v693
    %v695 = vmul.f32 %v558, 1.442695
    %v696 = vpow.pop %v695
    %v697 = vmul.f32 %v559, 1.442695
    %v698 = vpow.pop %v697
    %v699 = vmul.f32 %v560, 1.442695
    %v700 = vpow.pop %v699
    %v701 = vmul.f32 %v561, 1.442695
    %v702 = vpow.pop %v701
    %v703 = vmul.f32 %v562, 1.442695
    %v704 = vpow.pop %v703
    %v705 = vmul.f32 %v563, 1.442695
    %v706 = vpow.pop %v705
    %v707 = vmul.f32 %v564, 1.442695
    %v708 = vpow.pop %v707
    %v709 = vmul.f32 %v565, 1.442695
    %v710 = vpow.pop %v709
    %v711 = vmul.f32 %v566, 1.442695
    %v712 = vpow.pop %v711
    %v713 = vmul.f32 %v567, 1.442695
    %v714 = vpow.pop %v713
    %v715 = vmul.f32 %v568, 1.442695
    %v716 = vpow.pop %v715
    %v717 = vmul.f32 %v569, 1.442695
    %v718 = vpow.pop %v717
    %v719 = vmul.f32 %v570, 1.442695
    %v720 = vpow.pop %v719
    %v721 = vmul.f32 %v571, 1.442695
    %v722 = vpow.pop %v721
    %v723 = vmul.f32 %v572, 1.442695
    %v724 = vpow.pop %v723
    %v725 = vmul.f32 %v573, 1.442695
    %v726 = vpow.pop %v725
    %v727 = vmul.f32 %v574, 1.442695
    %v728 = vpow.pop %v727
    %v729 = vmul.f32 %v575, 1.442695
    %v730 = vpow.pop %v729
    %v731 = vmul.f32 %v576, 1.442695
    %v732 = vpow.pop %v731
    %v733 = vmul.f32 %v577, 1.442695
    %v734 = vpow.pop %v733
    %v735 = vmul.f32 %v578, 1.442695
    %v736 = vpow.pop %v735
    %v737 = vmul.f32 %v579, 1.442695
    %v738 = vpow.pop %v737
    %v739 = vmul.f32 %v580, 1.442695
    %v740 = vpow.pop %v739
    %v741 = vmul.f32 %v581, 1.442695
    %v742 = vpow.pop %v741
    %v743 = vmul.f32 %v582, 1.442695
    %v744 = vpow.pop %v743
    %v745 = vmul.f32 %v583, 1.442695
    %v746 = vpow.pop %v745
    %v747 = vmul.f32 %v584, 1.442695
    %v748 = vpow.pop %v747
    %v749 = vmul.f32 %v585, 1.442695
    %v750 = vpow.pop %v749
    %v751 = vmul.f32 %v586, 1.442695
    %v752 = vpow.pop %v751
    %v753 = vmul.f32 %v587, 1.442695
    %v754 = vpow.pop %v753
    %v755 = vmul.f32 %v588, 1.442695
    %v756 = vpow.pop %v755
    %v757 = vmul.f32 %v589, 1.442695
    %v758 = vpow.pop %v757
    %v759 = vmul.f32 %v590, 1.442695
    %v760 = vpow.pop %v759
    %v761 = vmul.f32 %v591, 1.442695
    %v762 = vpow.pop %v761
    %v763 = vmul.f32 %v592, 1.442695
    %v764 = vpow.pop %v763
    %v765 = vmul.f32 %v593, 1.442695
    %v766 = vpow.pop %v765
    %v767 = vmul.f32 %v594, 1.442695
    %v768 = vpow.pop %v767
    %v769 = vmul.f32 %v595, 1.442695
    %v770 = vpow.pop %v769
    %v771 = vmul.f32 %v596, 1.442695
    %v772 = vpow.pop %v771
    %v773 = vmul.f32 %v597, 1.442695
    %v774 = vpow.pop %v773
    %v775 = vmul.f32 %v598, 1.442695
    %v776 = vpow.pop %v775
    %v777 = vmul.f32 %v599, 1.442695
    %v778 = vpow.pop %v777
    %v779 = vmul.f32 %v600, 1.442695
    %v780 = vpow.pop %v779
    %v781 = vmul.f32 %v601, 1.442695
    %v782 = vpow.pop %v781
    %v783 = vmul.f32 %v602, 1.442695
    %v784 = vpow.pop %v783
    %v785 = vmul.f32 %v603, 1.442695
    %v786 = vpow.pop %v785
    %v787 = vmul.f32 %v604, 1.442695
    %v788 = vpow.pop %v787
    %v789 = vmul.f32 %v605, 1.442695
    %v790 = vpow.pop %v789
    %v791 = vmul.f32 %v606, 1.442695
    %v792 = vpow.pop %v791
    %v793 = vmul.f32 %v607, 1.442695
    %v794 = vpow.pop %v793
    %v795 = vmul.f32 %v608, 1.442695
    %v796 = vpow.pop %v795
    %v797 = vmul.f32 %v609, 1.442695
    %v798 = vpow.pop %v797
    %v799 = vmul.f32 %v610, 1.442695
    %v800 = vpow.pop %v799
    %v801 = vmul.f32 %v611, 1.442695
    %v802 = vpow.pop %v801
    %v803 = vmul.f32 %v612, 1.442695
    %v804 = vpow.pop %v803
    %v805 = vmul.f32 %v613, 1.442695
    %v806 = vpow.pop %v805
    %v807 = vmul.f32 %v614, 1.442695
    %v808 = vpow.pop %v807
    %v809 = vmul.f32 %v615, 1.442695
    %v810 = vpow.pop %v809
    %v811 = vmul.f32 %v616, 1.442695
    %v812 = vpow.pop %v811
    %v813 = vmul.f32 %v617, 1.442695
    %v814 = vpow.pop %v813
    %v815 = vmul.f32 %v618, 1.442695
    %v816 = vpow.pop %v815
    %v817 = vmul.f32 %v619, 1.442695
    %v818 = vpow.pop %v817
    %v819 = vmul.f32 %v620, 1.442695
    %v820 = vpow.pop %v819
    %v821 = vmul.f32 %v621, 1.442695
    %v822 = vpow.pop %v821
    %v823 = vmul.f32 %v622, 1.442695
    %v824 = vpow.pop %v823
    %v825 = vmul.f32 %v623, 1.442695
    %v826 = vpow.pop %v825
    %v827 = vmul.f32 %v624, 1.442695
    %v828 = vpow.pop %v827
    %v829 = vmul.f32 %v625, 1.442695
    %v830 = vpow.pop %v829
    %v831 = vmul.f32 %v626, 1.442695
    %v832 = vpow.pop %v831
    %v833 = vmul.f32 %v627, 1.442695
    %v834 = vpow.pop %v833
    %v835 = vmul.f32 %v628, 1.442695
    %v836 = vpow.pop %v835
    %v837 = vmul.f32 %v629, 1.442695
    %v838 = vpow.pop %v837
    %v839 = vmul.f32 %v630, 1.442695
    %v840 = vpow.pop %v839
    %v841 = vmul.f32 %v631, 1.442695
    %v842 = vpow.pop %v841
    %v843 = vmul.f32 %v632, 1.442695
    %v844 = vpow.pop %v843
    %v845 = vmul.f32 %v633, 1.442695
    %v846 = vpow.pop %v845
    %v847 = vmul.f32 %v634, 1.442695
    %v848 = vpow.pop %v847
    %v849 = vmul.f32 %v635, 1.442695
    %v850 = vpow.pop %v849
    %v851 = vmul.f32 %v636, 1.442695
    %v852 = vpow.pop %v851
    %v853 = vmul.f32 %v637, 1.442695
    %v854 = vpow.pop %v853
    %v855 = vmul.f32 %v638, 1.442695
    %v856 = vpow.pop %v855
    %v857 = vmul.f32 %v639, 1.442695
    %v858 = vpow.pop %v857
    %v859 = vmul.f32 %v640, 1.442695
    %v860 = vpow.pop %v859
    %v861 = vmul.f32 %v641, 1.442695
    %v862 = vpow.pop %v861
    %v863 = vmul.f32 %v642, 1.442695
    %v864 = vpow.pop %v863
    %v865 = vmul.f32 %v643, 1.442695
    %v866 = vpow.pop %v865
    %v867 = vmul.f32 %v644, 1.442695
    %v868 = vpow.pop %v867
    %v869 = vmul.f32 %v645, 1.442695
    %v870 = vpow.pop %v869
    %v871 = vmul.f32 %v646, 1.442695
    %v872 = vpow.pop %v871
    %v873 = vmul.f32 %v647, 1.442695
    %v874 = vpow.pop %v873
    %v875 = vmul.f32 %v648, 1.442695
    %v876 = vpow.pop %v875
    %v877 = vmul.f32 %v649, 1.442695
    %v878 = vpow.pop %v877
    %v879 = vmul.f32 %v650, 1.442695
    %v880 = vpow.pop %v879
    %v881 = vmul.f32 %v651, 1.442695
    %v882 = vpow.pop %v881
    %v883 = vmul.f32 %v652, 1.442695
    %v884 = vpow.pop %v883
    %v885 = vmul.f32 %v653, 1.442695
    %v886 = vpow.pop %v885
    %v887 = vmul.f32 %v654, 1.442695
    %v888 = vpow.pop %v887
    %v889 = vmul.f32 %v655, 1.442695
    %v890 = vpow.pop %v889
    %v891 = vmul.f32 %v656, 1.442695
    %v892 = vpow.pop %v891
    %v893 = vmul.f32 %v657, 1.442695
    %v894 = vpow.pop %v893
    %v895 = vmul.f32 %v658, 1.442695
    %v896 = vpow.pop %v895
    %v897 = vmul.f32 %v659, 1.442695
    %v898 = vpow.pop %v897
    %v899 = vmul.f32 %v660, 1.442695
    %v900 = vpow.pop %v899
    %v901 = vmul.f32 %v661, 1.442695
    %v902 = vpow.pop %v901
    %v903 = vmul.f32 %v662, 1.442695
    %v904 = vpow.pop %v903
    %v905 = vmul.f32 %v663, 1.442695
    %v906 = vpow.pop %v905
    %v907 = vmul.f32 %v664, 1.442695
    %v908 = vpow.pop %v907
    %v909 = vmul.f32 %v665, 1.442695
    %v910 = vpow.pop %v909
    %v911 = vmul.f32 %v666, 1.442695
    %v912 = vpow.pop %v911
    %v913 = vmul.f32 %v667, 1.442695
    %v914 = vpow.pop %v913
    %v915 = vmul.f32 %v668, 1.442695
    %v916 = vpow.pop %v915
    %v917 = vmul.f32 %v669, 1.442695
    %v918 = vpow.pop %v917
    %v919 = vmul.f32 %v670, 1.442695
    %v920 = vpow.pop %v919
    %v921 = vmul.f32 %v671, 1.442695
    %v922 = vpow.pop %v921
    %v923 = vmul.f32 %v672, 1.442695
    %v924 = vpow.pop %v923
    %v925 = vmul.f32 %v673, 1.442695
    %v926 = vpow.pop %v925
    %v927 = vmul.f32 %v674, 1.442695
    %v928 = vpow.pop %v927
    %v929 = vmul.f32 %v675, 1.442695
    %v930 = vpow.pop %v929
    %v931 = vmul.f32 %v676, 1.442695
    %v932 = vpow.pop %v931
    %v933 = vadd.f32 %v678, %v680
    %v934 = vadd.f32 %v933, %v682
    %v935 = vadd.f32 %v934, %v684
    %v936 = vrot.slane %v935, 4
    %v937 = vadd.f32 %v935, %v936
    %v938 = vrot.slane %v937, 2
    %v939 = vadd.f32 %v937, %v938
    %v940 = vrot.slane %v939, 1
    %v941 = vadd.f32 %v939, %v940
    %v942 = vadd.f32 %v686, %v688
    %v943 = vadd.f32 %v942, %v690
    %v944 = vadd.f32 %v943, %v692
    %v945 = vrot.slane %v944, 4
    %v946 = vadd.f32 %v944, %v945
    %v947 = vrot.slane %v946, 2
    %v948 = vadd.f32 %v946, %v947
    %v949 = vrot.slane %v948, 1
    %v950 = vadd.f32 %v948, %v949
    %v951 = vadd.f32 %v694, %v696
    %v952 = vadd.f32 %v951, %v698
    %v953 = vadd.f32 %v952, %v700
    %v954 = vrot.slane %v953, 4
    %v955 = vadd.f32 %v953, %v954
    %v956 = vrot.slane %v955, 2
    %v957 = vadd.f32 %v955, %v956
    %v958 = vrot.slane %v957, 1
    %v959 = vadd.f32 %v957, %v958
    %v960 = vadd.f32 %v702, %v704
    %v961 = vadd.f32 %v960, %v706
    %v962 = vadd.f32 %v961, %v708
    %v963 = vrot.slane %v962, 4
    %v964 = vadd.f32 %v962, %v963
    %v965 = vrot.slane %v964, 2
    %v966 = vadd.f32 %v964, %v965
    %v967 = vrot.slane %v966, 1
    %v968 = vadd.f32 %v966, %v967
    %v969 = vadd.f32 %v710, %v712
    %v970 = vadd.f32 %v969, %v714
    %v971 = vadd.f32 %v970, %v716
    %v972 = vrot.slane %v971, 4
    %v973 = vadd.f32 %v971, %v972
    %v974 = vrot.slane %v973, 2
    %v975 = vadd.f32 %v973, %v974
    %v976 = vrot.slane %v975, 1
    %v977 = vadd.f32 %v975, %v976
    %v978 = vadd.f32 %v718, %v720
    %v979 = vadd.f32 %v978, %v722
    %v980 = vadd.f32 %v979, %v724
    %v981 = vrot.slane %v980, 4
    %v982 = vadd.f32 %v980, %v981
    %v983 = vrot.slane %v982, 2
    %v984 = vadd.f32 %v982, %v983
    %v985 = vrot.slane %v984, 1
    %v986 = vadd.f32 %v984, %v985
    %v987 = vadd.f32 %v726, %v728
    %v988 = vadd.f32 %v987, %v730
    %v989 = vadd.f32 %v988, %v732
    %v990 = vrot.slane %v989, 4
    %v991 = vadd.f32 %v989, %v990
    %v992 = vrot.slane %v991, 2
    %v993 = vadd.f32 %v991, %v992
    %v994 = vrot.slane %v993, 1
    %v995 = vadd.f32 %v993, %v994
    %v996 = vadd.f32 %v734, %v736
    %v997 = vadd.f32 %v996, %v738
    %v998 = vadd.f32 %v997, %v740
    %v999 = vrot.slane %v998, 4
    %v1000 = vadd.f32 %v998, %v999
    %v1001 = vrot.slane %v1000, 2
    %v1002 = vadd.f32 %v1000, %v1001
    %v1003 = vrot.slane %v1002, 1
    %v1004 = vadd.f32 %v1002, %v1003
    %v1005 = vadd.f32 %v742, %v744
    %v1006 = vadd.f32 %v1005, %v746
    %v1007 = vadd.f32 %v1006, %v748
    %v1008 = vrot.slane %v1007, 4
    %v1009 = vadd.f32 %v1007, %v1008
    %v1010 = vrot.slane %v1009, 2
    %v1011 = vadd.f32 %v1009, %v1010
    %v1012 = vrot.slane %v1011, 1
    %v1013 = vadd.f32 %v1011, %v1012
    %v1014 = vadd.f32 %v750, %v752
    %v1015 = vadd.f32 %v1014, %v754
    %v1016 = vadd.f32 %v1015, %v756
    %v1017 = vrot.slane %v1016, 4
    %v1018 = vadd.f32 %v1016, %v1017
    %v1019 = vrot.slane %v1018, 2
    %v1020 = vadd.f32 %v1018, %v1019
    %v1021 = vrot.slane %v1020, 1
    %v1022 = vadd.f32 %v1020, %v1021
    %v1023 = vadd.f32 %v758, %v760
    %v1024 = vadd.f32 %v1023, %v762
    %v1025 = vadd.f32 %v1024, %v764
    %v1026 = vrot.slane %v1025, 4
    %v1027 = vadd.f32 %v1025, %v1026
    %v1028 = vrot.slane %v1027, 2
    %v1029 = vadd.f32 %v1027, %v1028
    %v1030 = vrot.slane %v1029, 1
    %v1031 = vadd.f32 %v1029, %v1030
    %v1032 = vadd.f32 %v766, %v768
    %v1033 = vadd.f32 %v1032, %v770
    %v1034 = vadd.f32 %v1033, %v772
    %v1035 = vrot.slane %v1034, 4
    %v1036 = vadd.f32 %v1034, %v1035
    %v1037 = vrot.slane %v1036, 2
    %v1038 = vadd.f32 %v1036, %v1037
    %v1039 = vrot.slane %v1038, 1
    %v1040 = vadd.f32 %v1038, %v1039
    %v1041 = vadd.f32 %v774, %v776
    %v1042 = vadd.f32 %v1041, %v778
    %v1043 = vadd.f32 %v1042, %v780
    %v1044 = vrot.slane %v1043, 4
    %v1045 = vadd.f32 %v1043, %v1044
    %v1046 = vrot.slane %v1045, 2
    %v1047 = vadd.f32 %v1045, %v1046
    %v1048 = vrot.slane %v1047, 1
    %v1049 = vadd.f32 %v1047, %v1048
    %v1050 = vadd.f32 %v782, %v784
    %v1051 = vadd.f32 %v1050, %v786
    %v1052 = vadd.f32 %v1051, %v788
    %v1053 = vrot.slane %v1052, 4
    %v1054 = vadd.f32 %v1052, %v1053
    %v1055 = vrot.slane %v1054, 2
    %v1056 = vadd.f32 %v1054, %v1055
    %v1057 = vrot.slane %v1056, 1
    %v1058 = vadd.f32 %v1056, %v1057
    %v1059 = vadd.f32 %v790, %v792
    %v1060 = vadd.f32 %v1059, %v794
    %v1061 = vadd.f32 %v1060, %v796
    %v1062 = vrot.slane %v1061, 4
    %v1063 = vadd.f32 %v1061, %v1062
    %v1064 = vrot.slane %v1063, 2
    %v1065 = vadd.f32 %v1063, %v1064
    %v1066 = vrot.slane %v1065, 1
    %v1067 = vadd.f32 %v1065, %v1066
    %v1068 = vadd.f32 %v798, %v800
    %v1069 = vadd.f32 %v1068, %v802
    %v1070 = vadd.f32 %v1069, %v804
    %v1071 = vrot.slane %v1070, 4
    %v1072 = vadd.f32 %v1070, %v1071
    %v1073 = vrot.slane %v1072, 2
    %v1074 = vadd.f32 %v1072, %v1073
    %v1075 = vrot.slane %v1074, 1
    %v1076 = vadd.f32 %v1074, %v1075
    %v1077 = vadd.f32 %v806, %v808
    %v1078 = vadd.f32 %v1077, %v810
    %v1079 = vadd.f32 %v1078, %v812
    %v1080 = vrot.slane %v1079, 4
    %v1081 = vadd.f32 %v1079, %v1080
    %v1082 = vrot.slane %v1081, 2
    %v1083 = vadd.f32 %v1081, %v1082
    %v1084 = vrot.slane %v1083, 1
    %v1085 = vadd.f32 %v1083, %v1084
    %v1086 = vadd.f32 %v814, %v816
    %v1087 = vadd.f32 %v1086, %v818
    %v1088 = vadd.f32 %v1087, %v820
    %v1089 = vrot.slane %v1088, 4
    %v1090 = vadd.f32 %v1088, %v1089
    %v1091 = vrot.slane %v1090, 2
    %v1092 = vadd.f32 %v1090, %v1091
    %v1093 = vrot.slane %v1092, 1
    %v1094 = vadd.f32 %v1092, %v1093
    %v1095 = vadd.f32 %v822, %v824
    %v1096 = vadd.f32 %v1095, %v826
    %v1097 = vadd.f32 %v1096, %v828
    %v1098 = vrot.slane %v1097, 4
    %v1099 = vadd.f32 %v1097, %v1098
    %v1100 = vrot.slane %v1099, 2
    %v1101 = vadd.f32 %v1099, %v1100
    %v1102 = vrot.slane %v1101, 1
    %v1103 = vadd.f32 %v1101, %v1102
    %v1104 = vadd.f32 %v830, %v832
    %v1105 = vadd.f32 %v1104, %v834
    %v1106 = vadd.f32 %v1105, %v836
    %v1107 = vrot.slane %v1106, 4
    %v1108 = vadd.f32 %v1106, %v1107
    %v1109 = vrot.slane %v1108, 2
    %v1110 = vadd.f32 %v1108, %v1109
    %v1111 = vrot.slane %v1110, 1
    %v1112 = vadd.f32 %v1110, %v1111
    %v1113 = vadd.f32 %v838, %v840
    %v1114 = vadd.f32 %v1113, %v842
    %v1115 = vadd.f32 %v1114, %v844
    %v1116 = vrot.slane %v1115, 4
    %v1117 = vadd.f32 %v1115, %v1116
    %v1118 = vrot.slane %v1117, 2
    %v1119 = vadd.f32 %v1117, %v1118
    %v1120 = vrot.slane %v1119, 1
    %v1121 = vadd.f32 %v1119, %v1120
    %v1122 = vadd.f32 %v846, %v848
    %v1123 = vadd.f32 %v1122, %v850
    %v1124 = vadd.f32 %v1123, %v852
    %v1125 = vrot.slane %v1124, 4
    %v1126 = vadd.f32 %v1124, %v1125
    %v1127 = vrot.slane %v1126, 2
    %v1128 = vadd.f32 %v1126, %v1127
    %v1129 = vrot.slane %v1128, 1
    %v1130 = vadd.f32 %v1128, %v1129
    %v1131 = vadd.f32 %v854, %v856
    %v1132 = vadd.f32 %v1131, %v858
    %v1133 = vadd.f32 %v1132, %v860
    %v1134 = vrot.slane %v1133, 4
    %v1135 = vadd.f32 %v1133, %v1134
    %v1136 = vrot.slane %v1135, 2
    %v1137 = vadd.f32 %v1135, %v1136
    %v1138 = vrot.slane %v1137, 1
    %v1139 = vadd.f32 %v1137, %v1138
    %v1140 = vadd.f32 %v862, %v864
    %v1141 = vadd.f32 %v1140, %v866
    %v1142 = vadd.f32 %v1141, %v868
    %v1143 = vrot.slane %v1142, 4
    %v1144 = vadd.f32 %v1142, %v1143
    %v1145 = vrot.slane %v1144, 2
    %v1146 = vadd.f32 %v1144, %v1145
    %v1147 = vrot.slane %v1146, 1
    %v1148 = vadd.f32 %v1146, %v1147
    %v1149 = vadd.f32 %v870, %v872
    %v1150 = vadd.f32 %v1149, %v874
    %v1151 = vadd.f32 %v1150, %v876
    %v1152 = vrot.slane %v1151, 4
    %v1153 = vadd.f32 %v1151, %v1152
    %v1154 = vrot.slane %v1153, 2
    %v1155 = vadd.f32 %v1153, %v1154
    %v1156 = vrot.slane %v1155, 1
    %v1157 = vadd.f32 %v1155, %v1156
    %v1158 = vadd.f32 %v878, %v880
    %v1159 = vadd.f32 %v1158, %v882
    %v1160 = vadd.f32 %v1159, %v884
    %v1161 = vrot.slane %v1160, 4
    %v1162 = vadd.f32 %v1160, %v1161
    %v1163 = vrot.slane %v1162, 2
    %v1164 = vadd.f32 %v1162, %v1163
    %v1165 = vrot.slane %v1164, 1
    %v1166 = vadd.f32 %v1164, %v1165
    %v1167 = vadd.f32 %v886, %v888
    %v1168 = vadd.f32 %v1167, %v890
    %v1169 = vadd.f32 %v1168, %v892
    %v1170 = vrot.slane %v1169, 4
    %v1171 = vadd.f32 %v1169, %v1170
    %v1172 = vrot.slane %v1171, 2
    %v1173 = vadd.f32 %v1171, %v1172
    %v1174 = vrot.slane %v1173, 1
    %v1175 = vadd.f32 %v1173, %v1174
    %v1176 = vadd.f32 %v894, %v896
    %v1177 = vadd.f32 %v1176, %v898
    %v1178 = vadd.f32 %v1177, %v900
    %v1179 = vrot.slane %v1178, 4
    %v1180 = vadd.f32 %v1178, %v1179
    %v1181 = vrot.slane %v1180, 2
    %v1182 = vadd.f32 %v1180, %v1181
    %v1183 = vrot.slane %v1182, 1
    %v1184 = vadd.f32 %v1182, %v1183
    %v1185 = vadd.f32 %v902, %v904
    %v1186 = vadd.f32 %v1185, %v906
    %v1187 = vadd.f32 %v1186, %v908
    %v1188 = vrot.slane %v1187, 4
    %v1189 = vadd.f32 %v1187, %v1188
    %v1190 = vrot.slane %v1189, 2
    %v1191 = vadd.f32 %v1189, %v1190
    %v1192 = vrot.slane %v1191, 1
    %v1193 = vadd.f32 %v1191, %v1192
    %v1194 = vadd.f32 %v910, %v912
    %v1195 = vadd.f32 %v1194, %v914
    %v1196 = vadd.f32 %v1195, %v916
    %v1197 = vrot.slane %v1196, 4
    %v1198 = vadd.f32 %v1196, %v1197
    %v1199 = vrot.slane %v1198, 2
    %v1200 = vadd.f32 %v1198, %v1199
    %v1201 = vrot.slane %v1200, 1
    %v1202 = vadd.f32 %v1200, %v1201
    %v1203 = vadd.f32 %v918, %v920
    %v1204 = vadd.f32 %v1203, %v922
    %v1205 = vadd.f32 %v1204, %v924
    %v1206 = vrot.slane %v1205, 4
    %v1207 = vadd.f32 %v1205, %v1206
    %v1208 = vrot.slane %v1207, 2
    %v1209 = vadd.f32 %v1207, %v1208
    %v1210 = vrot.slane %v1209, 1
    %v1211 = vadd.f32 %v1209, %v1210
    %v1212 = vadd.f32 %v926, %v928
    %v1213 = vadd.f32 %v1212, %v930
    %v1214 = vadd.f32 %v1213, %v932
    %v1215 = vrot.slane %v1214, 4
    %v1216 = vadd.f32 %v1214, %v1215
    %v1217 = vrot.slane %v1216, 2
    %v1218 = vadd.f32 %v1216, %v1217
    %v1219 = vrot.slane %v1218, 1
    %v1220 = vadd.f32 %v1218, %v1219
    %v1221 = vmul.f32 %v678, %v188
    %v1222 = vmul.f32 %v680, %v191
    %v1223 = vmul.f32 %v682, %v194
    %v1224 = vmul.f32 %v684, %v197
    %v1225 = vmul.f32 %v686, %v188
    %v1226 = vmul.f32 %v688, %v191
    %v1227 = vmul.f32 %v690, %v194
    %v1228 = vmul.f32 %v692, %v197
    %v1229 = vmul.f32 %v694, %v188
    %v1230 = vmul.f32 %v696, %v191
    %v1231 = vmul.f32 %v698, %v194
    %v1232 = vmul.f32 %v700, %v197
    %v1233 = vmul.f32 %v702, %v188
    %v1234 = vmul.f32 %v704, %v191
    %v1235 = vmul.f32 %v706, %v194
    %v1236 = vmul.f32 %v708, %v197
    %v1237 = vmul.f32 %v710, %v188
    %v1238 = vmul.f32 %v712, %v191
    %v1239 = vmul.f32 %v714, %v194
    %v1240 = vmul.f32 %v716, %v197
    %v1241 = vmul.f32 %v718, %v188
    %v1242 = vmul.f32 %v720, %v191
    %v1243 = vmul.f32 %v722, %v194
    %v1244 = vmul.f32 %v724, %v197
    %v1245 = vmul.f32 %v726, %v188
    %v1246 = vmul.f32 %v728, %v191
    %v1247 = vmul.f32 %v730, %v194
    %v1248 = vmul.f32 %v732, %v197
    %v1249 = vmul.f32 %v734, %v188
    %v1250 = vmul.f32 %v736, %v191
    %v1251 = vmul.f32 %v738, %v194
    %v1252 = vmul.f32 %v740, %v197
    %v1253 = vmul.f32 %v742, %v188
    %v1254 = vmul.f32 %v744, %v191
    %v1255 = vmul.f32 %v746, %v194
    %v1256 = vmul.f32 %v748, %v197
    %v1257 = vmul.f32 %v750, %v188
    %v1258 = vmul.f32 %v752, %v191
    %v1259 = vmul.f32 %v754, %v194
    %v1260 = vmul.f32 %v756, %v197
    %v1261 = vmul.f32 %v758, %v188
    %v1262 = vmul.f32 %v760, %v191
    %v1263 = vmul.f32 %v762, %v194
    %v1264 = vmul.f32 %v764, %v197
    %v1265 = vmul.f32 %v766, %v188
    %v1266 = vmul.f32 %v768, %v191
    %v1267 = vmul.f32 %v770, %v194
    %v1268 = vmul.f32 %v772, %v197
    %v1269 = vmul.f32 %v774, %v188
    %v1270 = vmul.f32 %v776, %v191
    %v1271 = vmul.f32 %v778, %v194
    %v1272 = vmul.f32 %v780, %v197
    %v1273 = vmul.f32 %v782, %v188
    %v1274 = vmul.f32 %v784, %v191
    %v1275 = vmul.f32 %v786, %v194
    %v1276 = vmul.f32 %v788, %v197
    %v1277 = vmul.f32 %v790, %v188
    %v1278 = vmul.f32 %v792, %v191
    %v1279 = vmul.f32 %v794, %v194
    %v1280 = vmul.f32 %v796, %v197
    %v1281 = vmul.f32 %v798, %v188
    %v1282 = vmul.f32 %v800, %v191
    %v1283 = vmul.f32 %v802, %v194
    %v1284 = vmul.f32 %v804, %v197
    %v1285 = vmul.f32 %v806, %v188
    %v1286 = vmul.f32 %v808, %v191
    %v1287 = vmul.f32 %v810, %v194
    %v1288 = vmul.f32 %v812, %v197
    %v1289 = vmul.f32 %v814, %v188
    %v1290 = vmul.f32 %v816, %v191
    %v1291 = vmul.f32 %v818, %v194
    %v1292 = vmul.f32 %v820, %v197
    %v1293 = vmul.f32 %v822, %v188
    %v1294 = vmul.f32 %v824, %v191
    %v1295 = vmul.f32 %v826, %v194
    %v1296 = vmul.f32 %v828, %v197
    %v1297 = vmul.f32 %v830, %v188
    %v1298 = vmul.f32 %v832, %v191
    %v1299 = vmul.f32 %v834, %v194
    %v1300 = vmul.f32 %v836, %v197
    %v1301 = vmul.f32 %v838, %v188
    %v1302 = vmul.f32 %v840, %v191
    %v1303 = vmul.f32 %v842, %v194
    %v1304 = vmul.f32 %v844, %v197
    %v1305 = vmul.f32 %v846, %v188
    %v1306 = vmul.f32 %v848, %v191
    %v1307 = vmul.f32 %v850, %v194
    %v1308 = vmul.f32 %v852, %v197
    %v1309 = vmul.f32 %v854, %v188
    %v1310 = vmul.f32 %v856, %v191
    %v1311 = vmul.f32 %v858, %v194
    %v1312 = vmul.f32 %v860, %v197
    %v1313 = vmul.f32 %v862, %v188
    %v1314 = vmul.f32 %v864, %v191
    %v1315 = vmul.f32 %v866, %v194
    %v1316 = vmul.f32 %v868, %v197
    %v1317 = vmul.f32 %v870, %v188
    %v1318 = vmul.f32 %v872, %v191
    %v1319 = vmul.f32 %v874, %v194
    %v1320 = vmul.f32 %v876, %v197
    %v1321 = vmul.f32 %v878, %v188
    %v1322 = vmul.f32 %v880, %v191
    %v1323 = vmul.f32 %v882, %v194
    %v1324 = vmul.f32 %v884, %v197
    %v1325 = vmul.f32 %v886, %v188
    %v1326 = vmul.f32 %v888, %v191
    %v1327 = vmul.f32 %v890, %v194
    %v1328 = vmul.f32 %v892, %v197
    %v1329 = vmul.f32 %v894, %v188
    %v1330 = vmul.f32 %v896, %v191
    %v1331 = vmul.f32 %v898, %v194
    %v1332 = vmul.f32 %v900, %v197
    %v1333 = vmul.f32 %v902, %v188
    %v1334 = vmul.f32 %v904, %v191
    %v1335 = vmul.f32 %v906, %v194
    %v1336 = vmul.f32 %v908, %v197
    %v1337 = vmul.f32 %v910, %v188
    %v1338 = vmul.f32 %v912, %v191
    %v1339 = vmul.f32 %v914, %v194
    %v1340 = vmul.f32 %v916, %v197
    %v1341 = vmul.f32 %v918, %v188
    %v1342 = vmul.f32 %v920, %v191
    %v1343 = vmul.f32 %v922, %v194
    %v1344 = vmul.f32 %v924, %v197
    %v1345 = vmul.f32 %v926, %v188
    %v1346 = vmul.f32 %v928, %v191
    %v1347 = vmul.f32 %v930, %v194
    %v1348 = vmul.f32 %v932, %v197
    %v1349 = vadd.f32 %v1221, %v1222
    %v1350 = vadd.f32 %v1349, %v1223
    %v1351 = vadd.f32 %v1350, %v1224
    %v1352 = vrot.slane %v1351, 4
    %v1353 = vadd.f32 %v1351, %v1352
    %v1354 = vrot.slane %v1353, 2
    %v1355 = vadd.f32 %v1353, %v1354
    %v1356 = vrot.slane %v1355, 1
    %v1357 = vadd.f32 %v1355, %v1356
    %v1358 = vadd.f32 %v1225, %v1226
    %v1359 = vadd.f32 %v1358, %v1227
    %v1360 = vadd.f32 %v1359, %v1228
    %v1361 = vrot.slane %v1360, 4
    %v1362 = vadd.f32 %v1360, %v1361
    %v1363 = vrot.slane %v1362, 2
    %v1364 = vadd.f32 %v1362, %v1363
    %v1365 = vrot.slane %v1364, 1
    %v1366 = vadd.f32 %v1364, %v1365
    %v1367 = vadd.f32 %v1229, %v1230
    %v1368 = vadd.f32 %v1367, %v1231
    %v1369 = vadd.f32 %v1368, %v1232
    %v1370 = vrot.slane %v1369, 4
    %v1371 = vadd.f32 %v1369, %v1370
    %v1372 = vrot.slane %v1371, 2
    %v1373 = vadd.f32 %v1371, %v1372
    %v1374 = vrot.slane %v1373, 1
    %v1375 = vadd.f32 %v1373, %v1374
    %v1376 = vadd.f32 %v1233, %v1234
    %v1377 = vadd.f32 %v1376, %v1235
    %v1378 = vadd.f32 %v1377, %v1236
    %v1379 = vrot.slane %v1378, 4
    %v1380 = vadd.f32 %v1378, %v1379
    %v1381 = vrot.slane %v1380, 2
    %v1382 = vadd.f32 %v1380, %v1381
    %v1383 = vrot.slane %v1382, 1
    %v1384 = vadd.f32 %v1382, %v1383
    %v1385 = vadd.f32 %v1237, %v1238
    %v1386 = vadd.f32 %v1385, %v1239
    %v1387 = vadd.f32 %v1386, %v1240
    %v1388 = vrot.slane %v1387, 4
    %v1389 = vadd.f32 %v1387, %v1388
    %v1390 = vrot.slane %v1389, 2
    %v1391 = vadd.f32 %v1389, %v1390
    %v1392 = vrot.slane %v1391, 1
    %v1393 = vadd.f32 %v1391, %v1392
    %v1394 = vadd.f32 %v1241, %v1242
    %v1395 = vadd.f32 %v1394, %v1243
    %v1396 = vadd.f32 %v1395, %v1244
    %v1397 = vrot.slane %v1396, 4
    %v1398 = vadd.f32 %v1396, %v1397
    %v1399 = vrot.slane %v1398, 2
    %v1400 = vadd.f32 %v1398, %v1399
    %v1401 = vrot.slane %v1400, 1
    %v1402 = vadd.f32 %v1400, %v1401
    %v1403 = vadd.f32 %v1245, %v1246
    %v1404 = vadd.f32 %v1403, %v1247
    %v1405 = vadd.f32 %v1404, %v1248
    %v1406 = vrot.slane %v1405, 4
    %v1407 = vadd.f32 %v1405, %v1406
    %v1408 = vrot.slane %v1407, 2
    %v1409 = vadd.f32 %v1407, %v1408
    %v1410 = vrot.slane %v1409, 1
    %v1411 = vadd.f32 %v1409, %v1410
    %v1412 = vadd.f32 %v1249, %v1250
    %v1413 = vadd.f32 %v1412, %v1251
    %v1414 = vadd.f32 %v1413, %v1252
    %v1415 = vrot.slane %v1414, 4
    %v1416 = vadd.f32 %v1414, %v1415
    %v1417 = vrot.slane %v1416, 2
    %v1418 = vadd.f32 %v1416, %v1417
    %v1419 = vrot.slane %v1418, 1
    %v1420 = vadd.f32 %v1418, %v1419
    %v1421 = vadd.f32 %v1253, %v1254
    %v1422 = vadd.f32 %v1421, %v1255
    %v1423 = vadd.f32 %v1422, %v1256
    %v1424 = vrot.slane %v1423, 4
    %v1425 = vadd.f32 %v1423, %v1424
    %v1426 = vrot.slane %v1425, 2
    %v1427 = vadd.f32 %v1425, %v1426
    %v1428 = vrot.slane %v1427, 1
    %v1429 = vadd.f32 %v1427, %v1428
    %v1430 = vadd.f32 %v1257, %v1258
    %v1431 = vadd.f32 %v1430, %v1259
    %v1432 = vadd.f32 %v1431, %v1260
    %v1433 = vrot.slane %v1432, 4
    %v1434 = vadd.f32 %v1432, %v1433
    %v1435 = vrot.slane %v1434, 2
    %v1436 = vadd.f32 %v1434, %v1435
    %v1437 = vrot.slane %v1436, 1
    %v1438 = vadd.f32 %v1436, %v1437
    %v1439 = vadd.f32 %v1261, %v1262
    %v1440 = vadd.f32 %v1439, %v1263
    %v1441 = vadd.f32 %v1440, %v1264
    %v1442 = vrot.slane %v1441, 4
    %v1443 = vadd.f32 %v1441, %v1442
    %v1444 = vrot.slane %v1443, 2
    %v1445 = vadd.f32 %v1443, %v1444
    %v1446 = vrot.slane %v1445, 1
    %v1447 = vadd.f32 %v1445, %v1446
    %v1448 = vadd.f32 %v1265, %v1266
    %v1449 = vadd.f32 %v1448, %v1267
    %v1450 = vadd.f32 %v1449, %v1268
    %v1451 = vrot.slane %v1450, 4
    %v1452 = vadd.f32 %v1450, %v1451
    %v1453 = vrot.slane %v1452, 2
    %v1454 = vadd.f32 %v1452, %v1453
    %v1455 = vrot.slane %v1454, 1
    %v1456 = vadd.f32 %v1454, %v1455
    %v1457 = vadd.f32 %v1269, %v1270
    %v1458 = vadd.f32 %v1457, %v1271
    %v1459 = vadd.f32 %v1458, %v1272
    %v1460 = vrot.slane %v1459, 4
    %v1461 = vadd.f32 %v1459, %v1460
    %v1462 = vrot.slane %v1461, 2
    %v1463 = vadd.f32 %v1461, %v1462
    %v1464 = vrot.slane %v1463, 1
    %v1465 = vadd.f32 %v1463, %v1464
    %v1466 = vadd.f32 %v1273, %v1274
    %v1467 = vadd.f32 %v1466, %v1275
    %v1468 = vadd.f32 %v1467, %v1276
    %v1469 = vrot.slane %v1468, 4
    %v1470 = vadd.f32 %v1468, %v1469
    %v1471 = vrot.slane %v1470, 2
    %v1472 = vadd.f32 %v1470, %v1471
    %v1473 = vrot.slane %v1472, 1
    %v1474 = vadd.f32 %v1472, %v1473
    %v1475 = vadd.f32 %v1277, %v1278
    %v1476 = vadd.f32 %v1475, %v1279
    %v1477 = vadd.f32 %v1476, %v1280
    %v1478 = vrot.slane %v1477, 4
    %v1479 = vadd.f32 %v1477, %v1478
    %v1480 = vrot.slane %v1479, 2
    %v1481 = vadd.f32 %v1479, %v1480
    %v1482 = vrot.slane %v1481, 1
    %v1483 = vadd.f32 %v1481, %v1482
    %v1484 = vadd.f32 %v1281, %v1282
    %v1485 = vadd.f32 %v1484, %v1283
    %v1486 = vadd.f32 %v1485, %v1284
    %v1487 = vrot.slane %v1486, 4
    %v1488 = vadd.f32 %v1486, %v1487
    %v1489 = vrot.slane %v1488, 2
    %v1490 = vadd.f32 %v1488, %v1489
    %v1491 = vrot.slane %v1490, 1
    %v1492 = vadd.f32 %v1490, %v1491
    %v1493 = vadd.f32 %v1285, %v1286
    %v1494 = vadd.f32 %v1493, %v1287
    %v1495 = vadd.f32 %v1494, %v1288
    %v1496 = vrot.slane %v1495, 4
    %v1497 = vadd.f32 %v1495, %v1496
    %v1498 = vrot.slane %v1497, 2
    %v1499 = vadd.f32 %v1497, %v1498
    %v1500 = vrot.slane %v1499, 1
    %v1501 = vadd.f32 %v1499, %v1500
    %v1502 = vadd.f32 %v1289, %v1290
    %v1503 = vadd.f32 %v1502, %v1291
    %v1504 = vadd.f32 %v1503, %v1292
    %v1505 = vrot.slane %v1504, 4
    %v1506 = vadd.f32 %v1504, %v1505
    %v1507 = vrot.slane %v1506, 2
    %v1508 = vadd.f32 %v1506, %v1507
    %v1509 = vrot.slane %v1508, 1
    %v1510 = vadd.f32 %v1508, %v1509
    %v1511 = vadd.f32 %v1293, %v1294
    %v1512 = vadd.f32 %v1511, %v1295
    %v1513 = vadd.f32 %v1512, %v1296
    %v1514 = vrot.slane %v1513, 4
    %v1515 = vadd.f32 %v1513, %v1514
    %v1516 = vrot.slane %v1515, 2
    %v1517 = vadd.f32 %v1515, %v1516
    %v1518 = vrot.slane %v1517, 1
    %v1519 = vadd.f32 %v1517, %v1518
    %v1520 = vadd.f32 %v1297, %v1298
    %v1521 = vadd.f32 %v1520, %v1299
    %v1522 = vadd.f32 %v1521, %v1300
    %v1523 = vrot.slane %v1522, 4
    %v1524 = vadd.f32 %v1522, %v1523
    %v1525 = vrot.slane %v1524, 2
    %v1526 = vadd.f32 %v1524, %v1525
    %v1527 = vrot.slane %v1526, 1
    %v1528 = vadd.f32 %v1526, %v1527
    %v1529 = vadd.f32 %v1301, %v1302
    %v1530 = vadd.f32 %v1529, %v1303
    %v1531 = vadd.f32 %v1530, %v1304
    %v1532 = vrot.slane %v1531, 4
    %v1533 = vadd.f32 %v1531, %v1532
    %v1534 = vrot.slane %v1533, 2
    %v1535 = vadd.f32 %v1533, %v1534
    %v1536 = vrot.slane %v1535, 1
    %v1537 = vadd.f32 %v1535, %v1536
    %v1538 = vadd.f32 %v1305, %v1306
    %v1539 = vadd.f32 %v1538, %v1307
    %v1540 = vadd.f32 %v1539, %v1308
    %v1541 = vrot.slane %v1540, 4
    %v1542 = vadd.f32 %v1540, %v1541
    %v1543 = vrot.slane %v1542, 2
    %v1544 = vadd.f32 %v1542, %v1543
    %v1545 = vrot.slane %v1544, 1
    %v1546 = vadd.f32 %v1544, %v1545
    %v1547 = vadd.f32 %v1309, %v1310
    %v1548 = vadd.f32 %v1547, %v1311
    %v1549 = vadd.f32 %v1548, %v1312
    %v1550 = vrot.slane %v1549, 4
    %v1551 = vadd.f32 %v1549, %v1550
    %v1552 = vrot.slane %v1551, 2
    %v1553 = vadd.f32 %v1551, %v1552
    %v1554 = vrot.slane %v1553, 1
    %v1555 = vadd.f32 %v1553, %v1554
    %v1556 = vadd.f32 %v1313, %v1314
    %v1557 = vadd.f32 %v1556, %v1315
    %v1558 = vadd.f32 %v1557, %v1316
    %v1559 = vrot.slane %v1558, 4
    %v1560 = vadd.f32 %v1558, %v1559
    %v1561 = vrot.slane %v1560, 2
    %v1562 = vadd.f32 %v1560, %v1561
    %v1563 = vrot.slane %v1562, 1
    %v1564 = vadd.f32 %v1562, %v1563
    %v1565 = vadd.f32 %v1317, %v1318
    %v1566 = vadd.f32 %v1565, %v1319
    %v1567 = vadd.f32 %v1566, %v1320
    %v1568 = vrot.slane %v1567, 4
    %v1569 = vadd.f32 %v1567, %v1568
    %v1570 = vrot.slane %v1569, 2
    %v1571 = vadd.f32 %v1569, %v1570
    %v1572 = vrot.slane %v1571, 1
    %v1573 = vadd.f32 %v1571, %v1572
    %v1574 = vadd.f32 %v1321, %v1322
    %v1575 = vadd.f32 %v1574, %v1323
    %v1576 = vadd.f32 %v1575, %v1324
    %v1577 = vrot.slane %v1576, 4
    %v1578 = vadd.f32 %v1576, %v1577
    %v1579 = vrot.slane %v1578, 2
    %v1580 = vadd.f32 %v1578, %v1579
    %v1581 = vrot.slane %v1580, 1
    %v1582 = vadd.f32 %v1580, %v1581
    %v1583 = vadd.f32 %v1325, %v1326
    %v1584 = vadd.f32 %v1583, %v1327
    %v1585 = vadd.f32 %v1584, %v1328
    %v1586 = vrot.slane %v1585, 4
    %v1587 = vadd.f32 %v1585, %v1586
    %v1588 = vrot.slane %v1587, 2
    %v1589 = vadd.f32 %v1587, %v1588
    %v1590 = vrot.slane %v1589, 1
    %v1591 = vadd.f32 %v1589, %v1590
    %v1592 = vadd.f32 %v1329, %v1330
    %v1593 = vadd.f32 %v1592, %v1331
    %v1594 = vadd.f32 %v1593, %v1332
    %v1595 = vrot.slane %v1594, 4
    %v1596 = vadd.f32 %v1594, %v1595
    %v1597 = vrot.slane %v1596, 2
    %v1598 = vadd.f32 %v1596, %v1597
    %v1599 = vrot.slane %v1598, 1
    %v1600 = vadd.f32 %v1598, %v1599
    %v1601 = vadd.f32 %v1333, %v1334
    %v1602 = vadd.f32 %v1601, %v1335
    %v1603 = vadd.f32 %v1602, %v1336
    %v1604 = vrot.slane %v1603, 4
    %v1605 = vadd.f32 %v1603, %v1604
    %v1606 = vrot.slane %v1605, 2
    %v1607 = vadd.f32 %v1605, %v1606
    %v1608 = vrot.slane %v1607, 1
    %v1609 = vadd.f32 %v1607, %v1608
    %v1610 = vadd.f32 %v1337, %v1338
    %v1611 = vadd.f32 %v1610, %v1339
    %v1612 = vadd.f32 %v1611, %v1340
    %v1613 = vrot.slane %v1612, 4
    %v1614 = vadd.f32 %v1612, %v1613
    %v1615 = vrot.slane %v1614, 2
    %v1616 = vadd.f32 %v1614, %v1615
    %v1617 = vrot.slane %v1616, 1
    %v1618 = vadd.f32 %v1616, %v1617
    %v1619 = vadd.f32 %v1341, %v1342
    %v1620 = vadd.f32 %v1619, %v1343
    %v1621 = vadd.f32 %v1620, %v1344
    %v1622 = vrot.slane %v1621, 4
    %v1623 = vadd.f32 %v1621, %v1622
    %v1624 = vrot.slane %v1623, 2
    %v1625 = vadd.f32 %v1623, %v1624
    %v1626 = vrot.slane %v1625, 1
    %v1627 = vadd.f32 %v1625, %v1626
    %v1628 = vadd.f32 %v1345, %v1346
    %v1629 = vadd.f32 %v1628, %v1347
    %v1630 = vadd.f32 %v1629, %v1348
    %v1631 = vrot.slane %v1630, 4
    %v1632 = vadd.f32 %v1630, %v1631
    %v1633 = vrot.slane %v1632, 2
    %v1634 = vadd.f32 %v1632, %v1633
    %v1635 = vrot.slane %v1634, 1
    %v1636 = vadd.f32 %v1634, %v1635
    %v1637 = vrcp.pop %v941
    %v1638 = vrcp.pop %v950
    %v1639 = vrcp.pop %v959
    %v1640 = vrcp.pop %v968
    %v1641 = vrcp.pop %v977
    %v1642 = vrcp.pop %v986
    %v1643 = vrcp.pop %v995
    %v1644 = vrcp.pop %v1004
    %v1645 = vrcp.pop %v1013
    %v1646 = vrcp.pop %v1022
    %v1647 = vrcp.pop %v1031
    %v1648 = vrcp.pop %v1040
    %v1649 = vrcp.pop %v1049
    %v1650 = vrcp.pop %v1058
    %v1651 = vrcp.pop %v1067
    %v1652 = vrcp.pop %v1076
    %v1653 = vrcp.pop %v1085
    %v1654 = vrcp.pop %v1094
    %v1655 = vrcp.pop %v1103
    %v1656 = vrcp.pop %v1112
    %v1657 = vrcp.pop %v1121
    %v1658 = vrcp.pop %v1130
    %v1659 = vrcp.pop %v1139
    %v1660 = vrcp.pop %v1148
    %v1661 = vrcp.pop %v1157
    %v1662 = vrcp.pop %v1166
    %v1663 = vrcp.pop %v1175
    %v1664 = vrcp.pop %v1184
    %v1665 = vrcp.pop %v1193
    %v1666 = vrcp.pop %v1202
    %v1667 = vrcp.pop %v1211
    %v1668 = vrcp.pop %v1220
    %v1669 = vmul.f32 %v1357, %v1637
    %v1670 = vmul.f32 %v1366, %v1638
    %v1671 = vmul.f32 %v1375, %v1639
    %v1672 = vmul.f32 %v1384, %v1640
    %v1673 = vmul.f32 %v1393, %v1641
    %v1674 = vmul.f32 %v1402, %v1642
    %v1675 = vmul.f32 %v1411, %v1643
    %v1676 = vmul.f32 %v1420, %v1644
    %v1677 = vmul.f32 %v1429, %v1645
    %v1678 = vmul.f32 %v1438, %v1646
    %v1679 = vmul.f32 %v1447, %v1647
    %v1680 = vmul.f32 %v1456, %v1648
    %v1681 = vmul.f32 %v1465, %v1649
    %v1682 = vmul.f32 %v1474, %v1650
    %v1683 = vmul.f32 %v1483, %v1651
    %v1684 = vmul.f32 %v1492, %v1652
    %v1685 = vmul.f32 %v1501, %v1653
    %v1686 = vmul.f32 %v1510, %v1654
    %v1687 = vmul.f32 %v1519, %v1655
    %v1688 = vmul.f32 %v1528, %v1656
    %v1689 = vmul.f32 %v1537, %v1657
    %v1690 = vmul.f32 %v1546, %v1658
    %v1691 = vmul.f32 %v1555, %v1659
    %v1692 = vmul.f32 %v1564, %v1660
    %v1693 = vmul.f32 %v1573, %v1661
    %v1694 = vmul.f32 %v1582, %v1662
    %v1695 = vmul.f32 %v1591, %v1663
    %v1696 = vmul.f32 %v1600, %v1664
    %v1697 = vmul.f32 %v1609, %v1665
    %v1698 = vmul.f32 %v1618, %v1666
    %v1699 = vmul.f32 %v1627, %v1667
    %v1700 = vmul.f32 %v1636, %v1668
    %v1701 = vld [vmem:[%s3] sm:$0xff]
    %v1702 = vld [vmem:[%s3 + $0x8] sm:$0xff]
    %v1703 = vld [vmem:[%s3 + $0x10] sm:$0xff]
    %v1704 = vld [vmem:[%s3 + $0x18] sm:$0xff]
    %v1705 = vld [vmem:[%s4] sm:$0xff]
    %v1706 = vld [vmem:[%s4 + $0x8] sm:$0xff]
    %v1707 = vld [vmem:[%s4 + $0x10] sm:$0xff]
    %v1708 = vld [vmem:[%s4 + $0x18] sm:$0xff]
    %1710 = vset.pattern.permute.xlu0 0
    %1711 = vperm.xlu0 %1710, %v1705
    %v1712 = vpop.permute.xlu0 %1711
    %1715 = vset.pattern.permute.xlu0 0
    %1716 = vperm.xlu0 %1715, %v1706
    %v1717 = vpop.permute.xlu0 %1716
    %1720 = vset.pattern.permute.xlu0 0
    %1721 = vperm.xlu0 %1720, %v1707
    %v1722 = vpop.permute.xlu0 %1721
    %1725 = vset.pattern.permute.xlu0 0
    %1726 = vperm.xlu0 %1725, %v1708
    %v1727 = vpop.permute.xlu0 %1726
    %vm1761 = vcmask 1041409
    %v1762 = vsel %vm1761, %v1670, %v1669
    %vm1763 = vcmask 1042434
    %v1764 = vsel %vm1763, %v1671, %v1762
    %vm1765 = vcmask 1043459
    %v1766 = vsel %vm1765, %v1672, %v1764
    %vm1767 = vcmask 1044484
    %v1768 = vsel %vm1767, %v1673, %v1766
    %vm1769 = vcmask 1045509
    %v1770 = vsel %vm1769, %v1674, %v1768
    %vm1771 = vcmask 1046534
    %v1772 = vsel %vm1771, %v1675, %v1770
    %vm1773 = vcmask 1047559
    %v1774 = vsel %vm1773, %v1676, %v1772
    %v1775 = vsel %vm1761, %v1678, %v1677
    %v1776 = vsel %vm1763, %v1679, %v1775
    %v1777 = vsel %vm1765, %v1680, %v1776
    %v1778 = vsel %vm1767, %v1681, %v1777
    %v1779 = vsel %vm1769, %v1682, %v1778
    %v1780 = vsel %vm1771, %v1683, %v1779
    %v1781 = vsel %vm1773, %v1684, %v1780
    %v1782 = vsel %vm1761, %v1686, %v1685
    %v1783 = vsel %vm1763, %v1687, %v1782
    %v1784 = vsel %vm1765, %v1688, %v1783
    %v1785 = vsel %vm1767, %v1689, %v1784
    %v1786 = vsel %vm1769, %v1690, %v1785
    %v1787 = vsel %vm1771, %v1691, %v1786
    %v1788 = vsel %vm1773, %v1692, %v1787
    %v1789 = vsel %vm1761, %v1694, %v1693
    %v1790 = vsel %vm1763, %v1695, %v1789
    %v1791 = vsel %vm1765, %v1696, %v1790
    %v1792 = vsel %vm1767, %v1697, %v1791
    %v1793 = vsel %vm1769, %v1698, %v1792
    %v1794 = vsel %vm1771, %v1699, %v1793
    %v1795 = vsel %vm1773, %v1700, %v1794
    %v1801 = vsel %vm109, %v1701, 0
    %v1804 = vsel %vm109, %v1702, 0
    %v1807 = vsel %vm109, %v1703, 0
    %v1810 = vsel %vm109, %v1704, 0
    %1812 = vmatpush.msra.mxu0 0.0
    %1813 = vmatpush.msra.mxu0 0.0
    %1814 = vmatpush.msra.mxu0 0.0
    %1815 = vmatpush.msra.mxu0 0.0
    %1816 = vmatpush.msra.mxu0 0.0
    %1817 = vmatpush.msra.mxu0 0.0
    %1818 = vmatpush.msra.mxu0 0.0
    %1819 = vmatpush.msra.mxu0 0.0
    %1820 = vmatpush.msra.mxu0 0.0
    %1821 = vmatpush.msra.mxu0 0.0
    %1822 = vmatpush.msra.mxu0 0.0
    %1823 = vmatpush.msra.mxu0 0.0
    %1824 = vmatpush.msra.mxu0 %v1795
    %1825 = vmatpush.msra.mxu0 %v1788
    %1826 = vmatpush.msra.mxu0 %v1781
    %1827 = vmatpush.msra.mxu0 %v1774
    %1828 = vmatmul.f32.gmra.mxu0 %v1801
    %v1829 = vpop.f32.mrf.mxu0
    %v1830 = vadd.f32 %v1712, %v1829
    %1831 = vmatmul.f32.gmra.mxu0 %v1804
    %v1832 = vpop.f32.mrf.mxu0
    %v1833 = vadd.f32 %v1717, %v1832
    %1834 = vmatmul.f32.gmra.mxu0 %v1807
    %v1835 = vpop.f32.mrf.mxu0
    %v1836 = vadd.f32 %v1722, %v1835
    %1837 = vmatmul.f32.gmra.mxu0 %v1810
    %v1838 = vpop.f32.mrf.mxu0
    %v1839 = vadd.f32 %v1727, %v1838
    %1840 = vdwg.mxu0
    %1841 = vst [vmem:[#allocation2] sm:$0xff] %v1830
    %1842 = vst [vmem:[#allocation2 + $0x8] sm:$0xff] %v1833
    %1843 = vst [vmem:[#allocation2 + $0x10] sm:$0xff] %v1836
    %1844 = vst [vmem:[#allocation2 + $0x18] sm:$0xff] %v1839
    // Predicated region
    $region22: #{tpu_custom_call.1} parent=1 // pred_check
      _
    $region23: #{tpu_custom_call.1} parent=1 // pred_check_branch
      %1846 = sbr.rel (0) target = $region25
    $region24: #{tpu_custom_call.1} parent=1 // pred_region
      %1848 = vsyncadd [#allocation3], 0
      %s1849 = sshll.u32 [#allocation2], 4
      %s1850 = int_to_ptr.vmem [resolvable:$true] %s1849
      %s1851 = sshll.u32 %s5, 4
      %s1852 = int_to_ptr.hbm [resolvable:$true] %s1851
      %1857 = dma.vmem_to_hbm [thread:$0]  %s1850, 512, %s1852, [#allocation3], 128, 128, 8
    $region25: #{tpu_custom_call.1} parent=1 // pred_fallthru
      _
    // Predicated region
    $region26: #{tpu_custom_call.1} parent=1 // pred_check
      _
    $region27: #{tpu_custom_call.1} parent=1 // pred_check_branch
      %1859 = sbr.rel (0) target = $region29
    $region28: #{tpu_custom_call.1} parent=1 // pred_region
      %1861 = dma.done [#allocation3], 512
    $region29: #{tpu_custom_call.1} parent=1 // pred_fallthru
      _
    %1862 = vsyncpa [#allocation3], 1

</llo_original>
